<compile_context>
chip_gen: v5e
topology: v5e:2x2
jax: 0.10.0
libtpu: 0.0.40
codegen_flags: <defaults>
</compile_context>

<pallas_src>
import functools

import jax
import jax.numpy as jnp
from jax.experimental import pallas as pl
from jax.experimental.pallas import tpu as pltpu


# --------------------------------- kernel -----------------------------------

def _pmm_kernel(alpha_ref, x_ref, w_ref, b_ref, o_ref, *, c8):
    """Fused PMM forward for one batch image.

    alpha_ref: (1, 1) f32 in SMEM
    x_ref:     (1, C, HW) f32
    w_ref:     (2*C8 + C, C)  packed [Wb; Wc; Wd]
    b_ref:     (2*C8 + C, 1)  packed [bb; bc; bd]
    o_ref:     (1, C, HW)
    """
    x = x_ref[0]                                         # (C, HW)

    # All three 1x1 convs as one packed MXU matmul + broadcast bias add.
    f = jnp.dot(w_ref[...], x, preferred_element_type=jnp.float32) + b_ref[...]
    fb = f[:c8]                                          # (C8, HW)
    fc = f[c8:2 * c8]                                    # (C8, HW)
    fd = f[2 * c8:]                                      # (C,  HW)

    # energy[i, j] = sum_k fb[k, i] * fc[k, j]           -> (HW, HW)
    energy = jax.lax.dot_general(
        fb, fc, (((0,), (0,)), ((), ())), preferred_element_type=jnp.float32)

    # softmax over j (lane dimension); normalize with an EUP reciprocal
    # (256 reciprocals) + VPU multiply instead of an HWxHW divide.
    m = jnp.max(energy, axis=-1, keepdims=True)
    p = jnp.exp(energy - m)
    inv = pl.reciprocal(jnp.sum(p, axis=-1, keepdims=True), approx=False)
    att = p * inv                                        # (HW, HW)

    # feat_e[c, i] = sum_j fd[c, j] * att[i, j]          -> (C, HW)
    fe = jax.lax.dot_general(
        fd, att, (((1,), (1,)), ((), ())), preferred_element_type=jnp.float32)

    alpha = alpha_ref[0, 0]
    o_ref[0] = (alpha * fe + x).astype(o_ref.dtype)


# -------------------------------- wrapper ------------------------------------

@jax.jit
def pmm_forward(params, x):
    """x: (B, C, H, W) NCHW (same as the PyTorch module). Returns (B, C, H, W)."""
    B, C, H, W = x.shape
    HW = H * W
    c8 = C // 8
    rows = 2 * c8 + C

    xf = x.reshape(B, C, HW)                             # contiguous reshape (free)
    kern = functools.partial(_pmm_kernel, c8=c8)

    out = pl.pallas_call(
        kern,
        out_shape=jax.ShapeDtypeStruct((B, C, HW), x.dtype),
        grid=(B,),
        in_specs=[
            pl.BlockSpec((1, 1), lambda b: (0, 0),
                         memory_space=pltpu.MemorySpace.SMEM),   # alpha scalar
            pl.BlockSpec((1, C, HW), lambda b: (b, 0, 0)),       # x (per image)
            pl.BlockSpec((rows, C), lambda b: (0, 0)),           # packed weights
            pl.BlockSpec((rows, 1), lambda b: (0, 0)),           # packed biases
        ],
        out_specs=pl.BlockSpec((1, C, HW), lambda b: (b, 0, 0)),
        compiler_params=pltpu.CompilerParams(
            dimension_semantics=("parallel",)),                  # v7x: 2 TCs
    )(params["alpha"], xf, params["w_all"], params["b_all"])
    return out.reshape(B, C, H, W)


# ------------------------------- parameters -----------------------------------

def init_pmm_params(key, c):
    c8 = c // 8
    ks = jax.random.split(key, 6)
    wb = 0.1 * jax.random.normal(ks[0], (c8, c), jnp.float32)   # conv_b 1x1 (OI)
    bb = 0.1 * jax.random.normal(ks[1], (c8,), jnp.float32)
    wc = 0.1 * jax.random.normal(ks[2], (c8, c), jnp.float32)   # conv_c 1x1
    bc = 0.1 * jax.random.normal(ks[3], (c8,), jnp.float32)
    wd = 0.1 * jax.random.normal(ks[4], (c, c), jnp.float32)    # conv_d 1x1
    bd = 0.1 * jax.random.normal(ks[5], (c,), jnp.float32)
    # nn.Parameter(torch.zeros(1)) initializes alpha to 0 (out == x); use a
    # nonzero value so the attention path is actually exercised/tested.
    alpha = jnp.full((1, 1), 0.75, jnp.float32)
    w_all = jnp.concatenate([wb, wc, wd], axis=0)               # (2*C8+C, C)
    b_all = jnp.concatenate([bb, bc, bd], axis=0).reshape(-1, 1)
    return {"w_all": w_all, "b_all": b_all, "alpha": alpha,
            "raw": (wb, bb, wc, bc, wd, bd)}


# --------------------------- pure-JAX reference -------------------------------

@jax.jit
def pmm_reference(params, x):
    wb, bb, wc, bc, wd, bd = params["raw"]
    alpha = params["alpha"][0, 0]
    B, C, H, W = x.shape
    xf = x.reshape(B, C, H * W)
    hp = jax.lax.Precision.HIGHEST
    fb = jnp.einsum("oc,bcn->bon", wb, xf, precision=hp) + bb[None, :, None]
    fc = jnp.einsum("oc,bcn->bon", wc, xf, precision=hp) + bc[None, :, None]
    fd = jnp.einsum("oc,bcn->bon", wd, xf, precision=hp) + bd[None, :, None]
    energy = jnp.einsum("bki,bkj->bij", fb, fc, precision=hp)   # (B, HW, HW)
    att = jax.nn.softmax(energy, axis=-1)
    fe = jnp.einsum("bcj,bij->bci", fd, att, precision=hp)      # (B, C, HW)
    out = alpha * fe + xf
    return out.reshape(B, C, H, W)


# ----------------------------------- main --------------------------------------

if __name__ == "__main__":
    B, C, H, W = 2, 64, 16, 16          # in_channels=64 (C//8=8), 16x16 spatial
    key = jax.random.PRNGKey(0)
    kp, kx = jax.random.split(key)
    params = init_pmm_params(kp, C)
    x = jax.random.normal(kx, (B, C, H, W), jnp.float32)        # NCHW like PyTorch

    out = jax.block_until_ready(pmm_forward(params, x))
    ref = jax.block_until_ready(pmm_reference(params, x))

    assert out.shape == (B, C, H, W), out.shape
    if not bool(jnp.allclose(out, ref, rtol=2e-3, atol=2e-3)):
        raise AssertionError(
            f"Pallas/XLA mismatch, max abs err = {float(jnp.max(jnp.abs(out - ref)))}")
    print("KERNEL_OK")
</pallas_src>

<mosaic_0001>
module attributes {stable_mosaic.version = 11 : i64} {
  func.func @_pmm_kernel(%arg0: i32, %arg1: memref<1x1xf32, #tpu.memory_space<smem>>, %arg2: memref<1x64x256xf32, #tpu.memory_space<vmem>>, %arg3: memref<80x64xf32, #tpu.memory_space<vmem>>, %arg4: memref<80x1xf32, #tpu.memory_space<vmem>>, %arg5: memref<1x64x256xf32, #tpu.memory_space<vmem>>) attributes {dimension_semantics = [#tpu.dimension_semantics<parallel>], iteration_bounds = array<i64: 2>, scalar_prefetch = 0 : i64, scratch_operands = 0 : i64, tpu.core_type = #tpu.core_type<tc>, window_params = [{transform_indices = @transform_0, window_bounds = array<i64: 1, 1>}, {transform_indices = @transform_1, window_bounds = array<i64: 1, 64, 256>}, {pipeline_mode = #tpu.pipeline_mode<synchronous>, transform_indices = @transform_2, window_bounds = array<i64: 80, 64>}, {pipeline_mode = #tpu.pipeline_mode<synchronous>, transform_indices = @transform_3, window_bounds = array<i64: 80, 1>}, {transform_indices = @transform_4, window_bounds = array<i64: 1, 64, 256>}]} {
    %c0 = arith.constant 0 : index
    %c0_0 = arith.constant 0 : index
    %c0_1 = arith.constant 0 : index
    %0 = vector.load %arg2[%c0, %c0_0, %c0_1] : memref<1x64x256xf32, #tpu.memory_space<vmem>>, vector<1x64x256xf32>
    %1 = vector.shape_cast %0 : vector<1x64x256xf32> to vector<64x256xf32>
    %c0_2 = arith.constant 0 : index
    %c0_3 = arith.constant 0 : index
    %2 = vector.load %arg3[%c0_2, %c0_3] : memref<80x64xf32, #tpu.memory_space<vmem>>, vector<80x64xf32>
    %cst = arith.constant dense<0.000000e+00> : vector<80x256xf32>
    %3 = tpu.matmul %2, %1, %cst {dimension_numbers = #tpu.dot_dimension_numbers<[1], [0], [0], [1], [0, 0, 1, 1], [], []>} : vector<80x64xf32>, vector<64x256xf32>, vector<80x256xf32> -> vector<80x256xf32>
    %c0_4 = arith.constant 0 : index
    %c0_5 = arith.constant 0 : index
    %4 = vector.load %arg4[%c0_4, %c0_5] : memref<80x1xf32, #tpu.memory_space<vmem>>, vector<80x1xf32>
    %5 = vector.broadcast %4 : vector<80x1xf32> to vector<80x256xf32>
    %6 = arith.addf %3, %5 : vector<80x256xf32>
    %7 = vector.extract_strided_slice %6 {offsets = [0, 0], sizes = [8, 256], strides = [1, 1]} : vector<80x256xf32> to vector<8x256xf32>
    %8 = vector.extract_strided_slice %6 {offsets = [8, 0], sizes = [8, 256], strides = [1, 1]} : vector<80x256xf32> to vector<8x256xf32>
    %9 = vector.extract_strided_slice %6 {offsets = [16, 0], sizes = [64, 256], strides = [1, 1]} : vector<80x256xf32> to vector<64x256xf32>
    %cst_6 = arith.constant dense<0.000000e+00> : vector<256x256xf32>
    %10 = tpu.matmul %7, %8, %cst_6 {dimension_numbers = #tpu.dot_dimension_numbers<[0], [0], [1], [1], [0, 1, 1, 1], [], []>} : vector<8x256xf32>, vector<8x256xf32>, vector<256x256xf32> -> vector<256x256xf32>
    %cst_7 = arith.constant dense<0xFF800000> : vector<256xf32>
    %11 = vector.multi_reduction <maximumf>, %10, %cst_7 [1] : vector<256x256xf32> to vector<256xf32>
    %12 = vector.shape_cast %11 : vector<256xf32> to vector<256x1xf32>
    %13 = vector.broadcast %12 : vector<256x1xf32> to vector<256x256xf32>
    %14 = arith.subf %10, %13 : vector<256x256xf32>
    %15 = math.exp %14 : vector<256x256xf32>
    %cst_8 = arith.constant dense<0.000000e+00> : vector<256xf32>
    %16 = vector.multi_reduction <add>, %15, %cst_8 [1] : vector<256x256xf32> to vector<256xf32>
    %17 = vector.shape_cast %16 : vector<256xf32> to vector<256x1xf32>
    %18 = tpu.reciprocal %17 : vector<256x1xf32> -> vector<256x1xf32>
    %19 = vector.broadcast %18 : vector<256x1xf32> to vector<256x256xf32>
    %20 = arith.mulf %15, %19 : vector<256x256xf32>
    %cst_9 = arith.constant dense<0.000000e+00> : vector<64x256xf32>
    %21 = tpu.matmul %9, %20, %cst_9 {dimension_numbers = #tpu.dot_dimension_numbers<[1], [1], [0], [0], [0, 0, 1, 0], [], []>} : vector<64x256xf32>, vector<256x256xf32>, vector<64x256xf32> -> vector<64x256xf32>
    %c0_10 = arith.constant 0 : index
    %c0_11 = arith.constant 0 : index
    %22 = memref.load %arg1[%c0_10, %c0_11] : memref<1x1xf32, #tpu.memory_space<smem>>
    %23 = vector.broadcast %22 : f32 to vector<64x256xf32>
    %24 = arith.mulf %23, %21 : vector<64x256xf32>
    %25 = arith.addf %24, %1 : vector<64x256xf32>
    %c0_12 = arith.constant 0 : index
    %c0_13 = arith.constant 0 : index
    %c0_14 = arith.constant 0 : index
    %26 = vector.load %arg5[%c0_12, %c0_13, %c0_14] : memref<1x64x256xf32, #tpu.memory_space<vmem>>, vector<1x64x256xf32>
    %27 = vector.shape_cast %26 : vector<1x64x256xf32> to vector<64x256xf32>
    %28 = vector.shape_cast %25 : vector<64x256xf32> to vector<1x64x256xf32>
    tpu.vector_store %arg5[%c0_12, %c0_13, %c0_14], %28 {strides = array<i32>} : memref<1x64x256xf32, #tpu.memory_space<vmem>>, vector<1x64x256xf32>,
    return
  }
  func.func @transform_0(%arg0: i32) -> (i32, i32) {
    %c0_i32 = arith.constant 0 : i32
    %c0_i32_0 = arith.constant 0 : i32
    %c0_i32_1 = arith.constant 0 : i32
    return %c0_i32, %c0_i32_0 : i32, i32
  }
  func.func @transform_1(%arg0: i32) -> (i32, i32, i32) {
    %c0_i32 = arith.constant 0 : i32
    %c0_i32_0 = arith.constant 0 : i32
    %c0_i32_1 = arith.constant 0 : i32
    return %arg0, %c0_i32, %c0_i32_0 : i32, i32, i32
  }
  func.func @transform_2(%arg0: i32) -> (i32, i32) {
    %c0_i32 = arith.constant 0 : i32
    %c0_i32_0 = arith.constant 0 : i32
    %c0_i32_1 = arith.constant 0 : i32
    return %c0_i32, %c0_i32_0 : i32, i32
  }
  func.func @transform_3(%arg0: i32) -> (i32, i32) {
    %c0_i32 = arith.constant 0 : i32
    %c0_i32_0 = arith.constant 0 : i32
    %c0_i32_1 = arith.constant 0 : i32
    return %c0_i32, %c0_i32_0 : i32, i32
  }
  func.func @transform_4(%arg0: i32) -> (i32, i32, i32) {
    %c0_i32 = arith.constant 0 : i32
    %c0_i32_0 = arith.constant 0 : i32
    %c0_i32_1 = arith.constant 0 : i32
    return %arg0, %c0_i32, %c0_i32_0 : i32, i32, i32
  }
}

</mosaic_0001>

<llo_original>
// kernel: pmm_forward.1
$region0: #{pmm_forward.1}
  #allocation0 [shape = 'u32[]', space=smem, size = 0x4, offset = 0x4, fixed_abs, tag = 'smem constant byte address 0x4 - core index']
  #allocation1 [shape = 'u32[72,128]{1,0:T(1,128)}', space=vmem, size = 0x9000, scoped, tag = 'internal scratch']
  #allocation2 [shape = 'f32[1,1]{1,0:T(1,128)S(6)}', space=smem, size = 0x200, scoped, tag = 'scoped memory for pmm_forward.1']
  %s0 = inlined_call_operand.<no memory space> [shape: f32[1,1], index: 0, kind: input, shape index: {}]
  %s1 = inlined_call_operand.vmem [shape: f32[2,64,256], index: 1, kind: input, shape index: {}]
  %s2 = inlined_call_operand.vmem [shape: f32[80,64], index: 2, kind: input, shape index: {}]
  %s3 = inlined_call_operand.vmem [shape: f32[80,1], index: 3, kind: input, shape index: {}]
  %s4 = inlined_call_operand.vmem [shape: f32[2,64,256], index: 4, kind: output, shape index: {}]
  %s5 = sld [smem:[#allocation0]]
  $region49: #{pmm_forward.1} parent=0
    _
  %s7 = ssub.s32 1, %s5
  %s8 = scalar_select 0, %s7, %s5
  %9 = sst [smem:[#allocation2]] %s0
  loop: start=0, step=1, limit=4
  $region2: #{pmm_forward.1} parent=0 // loop_pre_header
    _
  $region3: #{pmm_forward.1} parent=0 // loop_header
    %s11 = sphi 0, %s15
    %p12 = scmp.ge.s32.totalorder %s11, 4
    %s19 = sphi 0, %s19
    %s21 = sphi 0, %s19
    %s22 = sphi 0, %s21
    %s36 = sphi 0, %s22
    %s42 = sphi 0, %s44
    %s45 = sphi 0, %s42
    %s46 = sphi 0, %s45
    %s62 = sphi 0, %s46
    %s66 = sphi 0, %s66
    %s68 = sphi 0, %s66
    %s69 = sphi 0, %s68
    %s83 = sphi 0, %s69
    %s87 = sphi 0, %s87
    %s89 = sphi 0, %s87
    %s90 = sphi 0, %s89
    %s104 = sphi 0, %s90
    %s110 = sphi 0, %s112
    %s113 = sphi 0, %s110
    %s114 = sphi 0, %s113
    %s130 = sphi 0, %s114
  $region4: #{pmm_forward.1} parent=0 // loop_header_branch
    %14 = sbr.rel (%p12) target = $region8
  $region5: #{pmm_forward.1} parent=0 // loop_body
    %s16 = ssub.s32 %s11, 1
    %s17 = ssub.s32 %s11, 2
    %s18 = sadd.s32 %s11, 1
    %s20 = sadd.s32 %s19, 1
    %p23 = scmp.eq.s32.totalorder %s11, 1
    %p24 = scmp.ne.s32.totalorder %s19, %s21
    %p25 = scmp.eq.s32.totalorder %s11, 0
    %p26 = por %p24, %p25
    %p27 = scmp.ne.s32.totalorder %s19, %s21
    %p28 = scmp.eq.s32.totalorder %s16, 1
    %p29 = por %p27, %p28
    %p30 = scmp.ne.s32.totalorder %s21, %s22
    %p31 = scmp.eq.s32.totalorder %s16, 0
    %p32 = por %p30, %p31
    %p33 = scmp.ne.s32.totalorder %s21, %s22
    %p34 = scmp.eq.s32.totalorder %s17, 1
    %p35 = por %p33, %p34
    %p37 = scmp.ne.s32.totalorder %s22, %s36
    %p38 = scmp.eq.s32.totalorder %s17, 0
    %p39 = por %p37, %p38
    %s40 = ssub.s32 %s11, %s18
    %p41 = scmp.eq.s32.totalorder %s40, 0
    %s43 = sadd.s32 %s42, 1
    %s44 = scalar_select %p41, %s42, %s43
    %p47 = pneg %p41
    %p48 = scmp.eq.s32.totalorder %s11, 1
    %p49 = por %p47, %p48
    %p50 = scmp.ne.s32.totalorder %s42, %s45
    %p51 = scmp.eq.s32.totalorder %s11, 0
    %p52 = por %p50, %p51
    %p53 = scmp.ne.s32.totalorder %s42, %s45
    %p54 = scmp.eq.s32.totalorder %s16, 1
    %p55 = por %p53, %p54
    %p56 = scmp.ne.s32.totalorder %s45, %s46
    %p57 = scmp.eq.s32.totalorder %s16, 0
    %p58 = por %p56, %p57
    %p59 = scmp.ne.s32.totalorder %s45, %s46
    %p60 = scmp.eq.s32.totalorder %s17, 1
    %p61 = por %p59, %p60
    %p63 = scmp.ne.s32.totalorder %s46, %s62
    %p64 = scmp.eq.s32.totalorder %s17, 0
    %p65 = por %p63, %p64
    %s67 = sadd.s32 %s66, 1
    %p70 = scmp.eq.s32.totalorder %s11, 1
    %p71 = scmp.ne.s32.totalorder %s66, %s68
    %p72 = scmp.eq.s32.totalorder %s11, 0
    %p73 = por %p71, %p72
    %p74 = scmp.ne.s32.totalorder %s66, %s68
    %p75 = scmp.eq.s32.totalorder %s16, 1
    %p76 = por %p74, %p75
    %p77 = scmp.ne.s32.totalorder %s68, %s69
    %p78 = scmp.eq.s32.totalorder %s16, 0
    %p79 = por %p77, %p78
    %p80 = scmp.ne.s32.totalorder %s68, %s69
    %p81 = scmp.eq.s32.totalorder %s17, 1
    %p82 = por %p80, %p81
    %p84 = scmp.ne.s32.totalorder %s69, %s83
    %p85 = scmp.eq.s32.totalorder %s17, 0
    %p86 = por %p84, %p85
    %s88 = sadd.s32 %s87, 1
    %p91 = scmp.eq.s32.totalorder %s11, 1
    %p92 = scmp.ne.s32.totalorder %s87, %s89
    %p93 = scmp.eq.s32.totalorder %s11, 0
    %p94 = por %p92, %p93
    %p95 = scmp.ne.s32.totalorder %s87, %s89
    %p96 = scmp.eq.s32.totalorder %s16, 1
    %p97 = por %p95, %p96
    %p98 = scmp.ne.s32.totalorder %s89, %s90
    %p99 = scmp.eq.s32.totalorder %s16, 0
    %p100 = por %p98, %p99
    %p101 = scmp.ne.s32.totalorder %s89, %s90
    %p102 = scmp.eq.s32.totalorder %s17, 1
    %p103 = por %p101, %p102
    %p105 = scmp.ne.s32.totalorder %s90, %s104
    %p106 = scmp.eq.s32.totalorder %s17, 0
    %p107 = por %p105, %p106
    %s108 = ssub.s32 %s11, %s18
    %p109 = scmp.eq.s32.totalorder %s108, 0
    %s111 = sadd.s32 %s110, 1
    %s112 = scalar_select %p109, %s110, %s111
    %p115 = pneg %p109
    %p116 = scmp.eq.s32.totalorder %s11, 1
    %p117 = por %p115, %p116
    %p118 = scmp.ne.s32.totalorder %s110, %s113
    %p119 = scmp.eq.s32.totalorder %s11, 0
    %p120 = por %p118, %p119
    %p121 = scmp.ne.s32.totalorder %s110, %s113
    %p122 = scmp.eq.s32.totalorder %s16, 1
    %p123 = por %p121, %p122
    %p124 = scmp.ne.s32.totalorder %s113, %s114
    %p125 = scmp.eq.s32.totalorder %s16, 0
    %p126 = por %p124, %p125
    %p127 = scmp.ne.s32.totalorder %s113, %s114
    %p128 = scmp.eq.s32.totalorder %s17, 1
    %p129 = por %p127, %p128
    %p131 = scmp.ne.s32.totalorder %s114, %s130
    %p132 = scmp.eq.s32.totalorder %s17, 0
    %p133 = por %p131, %p132
    %p134 = scmp.le.s32.totalorder 1, %s11
    %p135 = scmp.lt.s32.totalorder %s11, 3
    %p136 = pnand %p134, %p135
    %p137 = pneg %p136
    // Predicated region
    $region9: #{pmm_forward.1} parent=5 // pred_check
      _
    $region10: #{pmm_forward.1} parent=5 // pred_check_branch
      %139 = sbr.rel (%p136) target = $region12
    $region11: #{pmm_forward.1} parent=5 // pred_region
      %s140 = ssub.s32 %s11, 1
      // Predicated region
      $region13: #{pmm_forward.1} parent=11 // pred_check
        %p141 = pneg %p32
      $region14: #{pmm_forward.1} parent=11 // pred_check_branch
        %143 = sbr.rel (%p141) target = $region16
      $region15: #{pmm_forward.1} parent=11 // pred_region
        _
      $region16: #{pmm_forward.1} parent=11 // pred_fallthru
        _
      // Predicated region
      $region17: #{pmm_forward.1} parent=11 // pred_check
        %p144 = pneg %p79
      $region18: #{pmm_forward.1} parent=11 // pred_check_branch
        %146 = sbr.rel (%p144) target = $region20
      $region19: #{pmm_forward.1} parent=11 // pred_region
        _
      $region20: #{pmm_forward.1} parent=11 // pred_fallthru
        _
      // Predicated region
      $region21: #{pmm_forward.1} parent=11 // pred_check
        %p147 = pneg %p100
      $region22: #{pmm_forward.1} parent=11 // pred_check_branch
        %149 = sbr.rel (%p147) target = $region24
      $region23: #{pmm_forward.1} parent=11 // pred_region
        _
      $region24: #{pmm_forward.1} parent=11 // pred_fallthru
        _
    $region12: #{pmm_forward.1} parent=5 // pred_fallthru
      _
    %p150 = scmp.lt.s32.totalorder %s11, 2
    // Predicated region
    $region25: #{pmm_forward.1} parent=5 // pred_check
      %p151 = pneg %p150
    $region26: #{pmm_forward.1} parent=5 // pred_check_branch
      %153 = sbr.rel (%p151) target = $region28
    $region27: #{pmm_forward.1} parent=5 // pred_region
      // Predicated region
      $region29: #{pmm_forward.1} parent=27 // pred_check
        %p154 = pneg %p52
      $region30: #{pmm_forward.1} parent=27 // pred_check_branch
        %156 = sbr.rel (%p154) target = $region32
      $region31: #{pmm_forward.1} parent=27 // pred_region
        %p157 = scmp.lt.s32.totalorder %s11, 1
        %s158 = scalar_select %p157, %s11, 1
        %s159 = smul.addr %s158, 16
        %s160 = smul.addr %s159, 8
        %s161 = scalar_lea.vmem %s1, %s160
      $region32: #{pmm_forward.1} parent=27 // pred_fallthru
        _
    $region28: #{pmm_forward.1} parent=5 // pred_fallthru
      _
    %p162 = scmp.le.s32.totalorder 1, %s11
    %p163 = scmp.lt.s32.totalorder %s11, 3
    %p164 = pnand %p162, %p163
    %p165 = pneg %p164
    // Predicated region
    $region33: #{pmm_forward.1} parent=5 // pred_check
      _
    $region34: #{pmm_forward.1} parent=5 // pred_check_branch
      %167 = sbr.rel (%p164) target = $region36
    $region35: #{pmm_forward.1} parent=5 // pred_region
      %s168 = ssub.s32 %s11, 1
      %p169 = pneg %p32
      %p170 = pneg %p29
      %p171 = scmp.lt.s32.totalorder %s16, 1
      %s172 = scalar_select %p171, %s16, 1
      %s173 = smul.addr %s172, 16
      %s174 = smul.addr %s173, 8
      %s175 = scalar_lea.vmem %s1, %s174
      %p176 = pneg %p58
      %p177 = pneg %p55
      %p178 = pneg %p79
      %p179 = pneg %p76
      %p180 = pneg %p100
      %p181 = pneg %p97
      %p182 = pneg %p126
      %p183 = pneg %p123
      %p184 = scmp.lt.s32.totalorder %s16, 1
      %s185 = scalar_select %p184, %s16, 1
      %s186 = smul.addr %s185, 16
      %s187 = smul.addr %s186, 8
      %s188 = scalar_lea.vmem %s4, %s187
      %p189 = scmp.lt.s32.totalorder %s16, 1
      %s190 = scalar_select %p189, %s16, 1
      %s191 = smul.addr %s190, 16
      %s192 = smul.addr %s191, 8
      %s193 = scalar_lea.vmem %s1, %s192
      %p194 = scmp.lt.s32.totalorder %s16, 1
      %s195 = scalar_select %p194, %s16, 1
      %s196 = smul.addr %s195, 16
      %s197 = smul.addr %s196, 8
      %s198 = scalar_lea.vmem %s4, %s197
      %v199 = vld [vmem:[%s193] sm:$0xff]
      %v200 = vld [vmem:[%s193 + $0x8] sm:$0xff]
      %v201 = vld [vmem:[%s193 + $0x10] sm:$0xff]
      %v202 = vld [vmem:[%s193 + $0x18] sm:$0xff]
      %v203 = vld [vmem:[%s193 + $0x20] sm:$0xff]
      %v204 = vld [vmem:[%s193 + $0x28] sm:$0xff]
      %v205 = vld [vmem:[%s193 + $0x30] sm:$0xff]
      %v206 = vld [vmem:[%s193 + $0x38] sm:$0xff]
      %v207 = vld [vmem:[%s193 + $0x40] sm:$0xff]
      %v208 = vld [vmem:[%s193 + $0x48] sm:$0xff]
      %v209 = vld [vmem:[%s193 + $0x50] sm:$0xff]
      %v210 = vld [vmem:[%s193 + $0x58] sm:$0xff]
      %v211 = vld [vmem:[%s193 + $0x60] sm:$0xff]
      %v212 = vld [vmem:[%s193 + $0x68] sm:$0xff]
      %v213 = vld [vmem:[%s193 + $0x70] sm:$0xff]
      %v214 = vld [vmem:[%s193 + $0x78] sm:$0xff]
      %v215 = vld [vmem:[%s2] sm:$0xff]
      %v216 = vld [vmem:[%s2 + $0x8] sm:$0xff]
      %v217 = vld [vmem:[%s2 + $0x10] sm:$0xff]
      %v218 = vld [vmem:[%s2 + $0x18] sm:$0xff]
      %v219 = vld [vmem:[%s2 + $0x20] sm:$0xff]
      %v220 = vld [vmem:[%s2 + $0x28] sm:$0xff]
      %v221 = vld [vmem:[%s2 + $0x30] sm:$0xff]
      %v222 = vld [vmem:[%s2 + $0x38] sm:$0xff]
      %v223 = vld [vmem:[%s2 + $0x40] sm:$0xff]
      %v224 = vld [vmem:[%s2 + $0x48] sm:$0xff]
      %v225 = vld [vmem:[%s3] sm:$0xff]
      %v226 = vld [vmem:[%s3 + $0x8] sm:$0xff]
      %v227 = vld [vmem:[%s3 + $0x10] sm:$0xff]
      %v228 = vld [vmem:[%s3 + $0x18] sm:$0xff]
      %v229 = vld [vmem:[%s3 + $0x20] sm:$0xff]
      %v230 = vld [vmem:[%s3 + $0x28] sm:$0xff]
      %v231 = vld [vmem:[%s3 + $0x30] sm:$0xff]
      %v232 = vld [vmem:[%s3 + $0x38] sm:$0xff]
      %v233 = vld [vmem:[%s3 + $0x40] sm:$0xff]
      %v234 = vld [vmem:[%s3 + $0x48] sm:$0xff]
      %236 = vset.pattern.permute.xlu0 0
      %237 = vperm.xlu0 %236, %v225
      %v238 = vpop.permute.xlu0 %237
      %241 = vset.pattern.permute.xlu0 0
      %242 = vperm.xlu0 %241, %v226
      %v243 = vpop.permute.xlu0 %242
      %246 = vset.pattern.permute.xlu0 0
      %247 = vperm.xlu0 %246, %v227
      %v248 = vpop.permute.xlu0 %247
      %251 = vset.pattern.permute.xlu0 0
      %252 = vperm.xlu0 %251, %v228
      %v253 = vpop.permute.xlu0 %252
      %256 = vset.pattern.permute.xlu0 0
      %257 = vperm.xlu0 %256, %v229
      %v258 = vpop.permute.xlu0 %257
      %261 = vset.pattern.permute.xlu0 0
      %262 = vperm.xlu0 %261, %v230
      %v263 = vpop.permute.xlu0 %262
      %266 = vset.pattern.permute.xlu0 0
      %267 = vperm.xlu0 %266, %v231
      %v268 = vpop.permute.xlu0 %267
      %271 = vset.pattern.permute.xlu0 0
      %272 = vperm.xlu0 %271, %v232
      %v273 = vpop.permute.xlu0 %272
      %276 = vset.pattern.permute.xlu0 0
      %277 = vperm.xlu0 %276, %v233
      %v278 = vpop.permute.xlu0 %277
      %281 = vset.pattern.permute.xlu0 0
      %282 = vperm.xlu0 %281, %v234
      %v283 = vpop.permute.xlu0 %282
      %vm285 = vcmask 523264
      %v287 = vsel %vm285, %v215, 0
      %v290 = vsel %vm285, %v216, 0
      %v293 = vsel %vm285, %v217, 0
      %v296 = vsel %vm285, %v218, 0
      %v299 = vsel %vm285, %v219, 0
      %v302 = vsel %vm285, %v220, 0
      %v305 = vsel %vm285, %v221, 0
      %v308 = vsel %vm285, %v222, 0
      %v311 = vsel %vm285, %v223, 0
      %v314 = vsel %vm285, %v224, 0
      %316 = vmatpush.msra.mxu0 0.0
      %317 = vmatpush.msra.mxu0 0.0
      %318 = vmatpush.msra.mxu0 0.0
      %319 = vmatpush.msra.mxu0 0.0
      %320 = vmatpush.msra.mxu0 0.0
      %321 = vmatpush.msra.mxu0 0.0
      %322 = vmatpush.msra.mxu0 0.0
      %323 = vmatpush.msra.mxu0 0.0
      %324 = vmatpush.msra.mxu0 %v213
      %325 = vmatpush.msra.mxu0 %v211
      %326 = vmatpush.msra.mxu0 %v209
      %327 = vmatpush.msra.mxu0 %v207
      %328 = vmatpush.msra.mxu0 %v205
      %329 = vmatpush.msra.mxu0 %v203
      %330 = vmatpush.msra.mxu0 %v201
      %331 = vmatpush.msra.mxu0 %v199
      %332 = vmatmul.f32.gmra.mxu0 %v287
      %v333 = vpop.f32.mrf.mxu0
      %v334 = vadd.f32 %v238, %v333
      %335 = vmatmul.f32.gmra.mxu0 %v290
      %v336 = vpop.f32.mrf.mxu0
      %v337 = vadd.f32 %v243, %v336
      %338 = vmatmul.f32.gmra.mxu0 %v293
      %v339 = vpop.f32.mrf.mxu0
      %v340 = vadd.f32 %v248, %v339
      %341 = vmatmul.f32.gmra.mxu0 %v296
      %v342 = vpop.f32.mrf.mxu0
      %v343 = vadd.f32 %v253, %v342
      %344 = vmatmul.f32.gmra.mxu0 %v299
      %v345 = vpop.f32.mrf.mxu0
      %v346 = vadd.f32 %v258, %v345
      %347 = vmatmul.f32.gmra.mxu0 %v302
      %v348 = vpop.f32.mrf.mxu0
      %v349 = vadd.f32 %v263, %v348
      %350 = vmatmul.f32.gmra.mxu0 %v305
      %v351 = vpop.f32.mrf.mxu0
      %v352 = vadd.f32 %v268, %v351
      %353 = vmatmul.f32.gmra.mxu0 %v308
      %v354 = vpop.f32.mrf.mxu0
      %v355 = vadd.f32 %v273, %v354
      %356 = vmatmul.f32.gmra.mxu0 %v311
      %v357 = vpop.f32.mrf.mxu0
      %v358 = vadd.f32 %v278, %v357
      %359 = vmatmul.f32.gmra.mxu0 %v314
      %v360 = vpop.f32.mrf.mxu0
      %v361 = vadd.f32 %v283, %v360
      %362 = vdwg.mxu0
      %363 = vmatpush.msra.mxu0 0.0
      %364 = vmatpush.msra.mxu0 0.0
      %365 = vmatpush.msra.mxu0 0.0
      %366 = vmatpush.msra.mxu0 0.0
      %367 = vmatpush.msra.mxu0 0.0
      %368 = vmatpush.msra.mxu0 0.0
      %369 = vmatpush.msra.mxu0 0.0
      %370 = vmatpush.msra.mxu0 0.0
      %371 = vmatpush.msra.mxu0 %v214
      %372 = vmatpush.msra.mxu0 %v212
      %373 = vmatpush.msra.mxu0 %v210
      %374 = vmatpush.msra.mxu0 %v208
      %375 = vmatpush.msra.mxu0 %v206
      %376 = vmatpush.msra.mxu0 %v204
      %377 = vmatpush.msra.mxu0 %v202
      %378 = vmatpush.msra.mxu0 %v200
      %379 = vmatmul.f32.gmra.mxu0 %v287
      %v380 = vpop.f32.mrf.mxu0
      %v381 = vadd.f32 %v238, %v380
      %382 = vmatmul.f32.gmra.mxu0 %v290
      %v383 = vpop.f32.mrf.mxu0
      %v384 = vadd.f32 %v243, %v383
      %385 = vmatmul.f32.gmra.mxu0 %v293
      %v386 = vpop.f32.mrf.mxu0
      %v387 = vadd.f32 %v248, %v386
      %388 = vmatmul.f32.gmra.mxu0 %v296
      %v389 = vpop.f32.mrf.mxu0
      %v390 = vadd.f32 %v253, %v389
      %391 = vmatmul.f32.gmra.mxu0 %v299
      %v392 = vpop.f32.mrf.mxu0
      %v393 = vadd.f32 %v258, %v392
      %394 = vmatmul.f32.gmra.mxu0 %v302
      %v395 = vpop.f32.mrf.mxu0
      %v396 = vadd.f32 %v263, %v395
      %397 = vmatmul.f32.gmra.mxu0 %v305
      %v398 = vpop.f32.mrf.mxu0
      %v399 = vadd.f32 %v268, %v398
      %400 = vmatmul.f32.gmra.mxu0 %v308
      %v401 = vpop.f32.mrf.mxu0
      %v402 = vadd.f32 %v273, %v401
      %403 = vmatmul.f32.gmra.mxu0 %v311
      %v404 = vpop.f32.mrf.mxu0
      %v405 = vadd.f32 %v278, %v404
      %406 = vmatmul.f32.gmra.mxu0 %v314
      %v407 = vpop.f32.mrf.mxu0
      %v408 = vadd.f32 %v283, %v407
      %409 = vdwg.mxu0
      %410 = vxpose.xlu0.b32.start [1/16] %v334, 128
      %411 = vxpose.xlu0.b32.cont [2/16] 0.0, 128
      %412 = vxpose.xlu0.b32.cont [3/16] 0.0, 128
      %413 = vxpose.xlu0.b32.cont [4/16] 0.0, 128
      %414 = vxpose.xlu0.b32.cont [5/16] 0.0, 128
      %415 = vxpose.xlu0.b32.cont [6/16] 0.0, 128
      %416 = vxpose.xlu0.b32.cont [7/16] 0.0, 128
      %417 = vxpose.xlu0.b32.cont [8/16] 0.0, 128
      %418 = vxpose.xlu0.b32.cont [9/16] 0.0, 128
      %419 = vxpose.xlu0.b32.cont [10/16] 0.0, 128
      %420 = vxpose.xlu0.b32.cont [11/16] 0.0, 128
      %421 = vxpose.xlu0.b32.cont [12/16] 0.0, 128
      %422 = vxpose.xlu0.b32.cont [13/16] 0.0, 128
      %423 = vxpose.xlu0.b32.cont [14/16] 0.0, 128
      %424 = vxpose.xlu0.b32.cont [15/16] 0.0, 128
      %425 = vxpose.xlu0.b32.end [16/16] 0.0, 128
      %v426 = vpop.trf.xlu0
      %v427 = vpop.trf.xlu0
      %v428 = vpop.trf.xlu0
      %v429 = vpop.trf.xlu0
      %v430 = vpop.trf.xlu0
      %v431 = vpop.trf.xlu0
      %v432 = vpop.trf.xlu0
      %v433 = vpop.trf.xlu0
      %v434 = vpop.trf.xlu0
      %v435 = vpop.trf.xlu0
      %v436 = vpop.trf.xlu0
      %v437 = vpop.trf.xlu0
      %v438 = vpop.trf.xlu0
      %v439 = vpop.trf.xlu0
      %v440 = vpop.trf.xlu0
      %v441 = vpop.trf.xlu0
      %442 = vxpose.xlu0.b32.start [1/16] %v381, 128
      %443 = vxpose.xlu0.b32.cont [2/16] 0.0, 128
      %444 = vxpose.xlu0.b32.cont [3/16] 0.0, 128
      %445 = vxpose.xlu0.b32.cont [4/16] 0.0, 128
      %446 = vxpose.xlu0.b32.cont [5/16] 0.0, 128
      %447 = vxpose.xlu0.b32.cont [6/16] 0.0, 128
      %448 = vxpose.xlu0.b32.cont [7/16] 0.0, 128
      %449 = vxpose.xlu0.b32.cont [8/16] 0.0, 128
      %450 = vxpose.xlu0.b32.cont [9/16] 0.0, 128
      %451 = vxpose.xlu0.b32.cont [10/16] 0.0, 128
      %452 = vxpose.xlu0.b32.cont [11/16] 0.0, 128
      %453 = vxpose.xlu0.b32.cont [12/16] 0.0, 128
      %454 = vxpose.xlu0.b32.cont [13/16] 0.0, 128
      %455 = vxpose.xlu0.b32.cont [14/16] 0.0, 128
      %456 = vxpose.xlu0.b32.cont [15/16] 0.0, 128
      %457 = vxpose.xlu0.b32.end [16/16] 0.0, 128
      %v458 = vpop.trf.xlu0
      %v459 = vpop.trf.xlu0
      %v460 = vpop.trf.xlu0
      %v461 = vpop.trf.xlu0
      %v462 = vpop.trf.xlu0
      %v463 = vpop.trf.xlu0
      %v464 = vpop.trf.xlu0
      %v465 = vpop.trf.xlu0
      %v466 = vpop.trf.xlu0
      %v467 = vpop.trf.xlu0
      %v468 = vpop.trf.xlu0
      %v469 = vpop.trf.xlu0
      %v470 = vpop.trf.xlu0
      %v471 = vpop.trf.xlu0
      %v472 = vpop.trf.xlu0
      %v473 = vpop.trf.xlu0
      %vm474 = vcmask 64512
      %v476 = vsel %vm474, %v426, 0
      %v479 = vsel %vm474, %v427, 0
      %v482 = vsel %vm474, %v428, 0
      %v485 = vsel %vm474, %v429, 0
      %v488 = vsel %vm474, %v430, 0
      %v491 = vsel %vm474, %v431, 0
      %v494 = vsel %vm474, %v432, 0
      %v497 = vsel %vm474, %v433, 0
      %v500 = vsel %vm474, %v434, 0
      %v503 = vsel %vm474, %v435, 0
      %v506 = vsel %vm474, %v436, 0
      %v509 = vsel %vm474, %v437, 0
      %v512 = vsel %vm474, %v438, 0
      %v515 = vsel %vm474, %v439, 0
      %v518 = vsel %vm474, %v440, 0
      %v521 = vsel %vm474, %v441, 0
      %v524 = vsel %vm474, %v458, 0
      %v527 = vsel %vm474, %v459, 0
      %v530 = vsel %vm474, %v460, 0
      %v533 = vsel %vm474, %v461, 0
      %v536 = vsel %vm474, %v462, 0
      %v539 = vsel %vm474, %v463, 0
      %v542 = vsel %vm474, %v464, 0
      %v545 = vsel %vm474, %v465, 0
      %v548 = vsel %vm474, %v466, 0
      %v551 = vsel %vm474, %v467, 0
      %v554 = vsel %vm474, %v468, 0
      %v557 = vsel %vm474, %v469, 0
      %v560 = vsel %vm474, %v470, 0
      %v563 = vsel %vm474, %v471, 0
      %v566 = vsel %vm474, %v472, 0
      %v569 = vsel %vm474, %v473, 0
      %571 = vmatpush.msra.mxu0 0.0
      %572 = vmatpush.msra.mxu0 0.0
      %573 = vmatpush.msra.mxu0 0.0
      %574 = vmatpush.msra.mxu0 0.0
      %575 = vmatpush.msra.mxu0 0.0
      %576 = vmatpush.msra.mxu0 0.0
      %577 = vmatpush.msra.mxu0 0.0
      %578 = vmatpush.msra.mxu0 0.0
      %579 = vmatpush.msra.mxu0 0.0
      %580 = vmatpush.msra.mxu0 0.0
      %581 = vmatpush.msra.mxu0 0.0
      %582 = vmatpush.msra.mxu0 0.0
      %583 = vmatpush.msra.mxu0 0.0
      %584 = vmatpush.msra.mxu0 0.0
      %585 = vmatpush.msra.mxu0 0.0
      %586 = vmatpush.msra.mxu0 %v337
      %587 = vmatmul.f32.gmra.mxu0 %v476
      %v588 = vpop.f32.mrf.mxu0
      %v589 = vadd.f32 0.0, %v588
      %590 = vmatmul.f32.gmra.mxu0 %v479
      %v591 = vpop.f32.mrf.mxu0
      %v592 = vadd.f32 0.0, %v591
      %593 = vmatmul.f32.gmra.mxu0 %v482
      %v594 = vpop.f32.mrf.mxu0
      %v595 = vadd.f32 0.0, %v594
      %596 = vmatmul.f32.gmra.mxu0 %v485
      %v597 = vpop.f32.mrf.mxu0
      %v598 = vadd.f32 0.0, %v597
      %599 = vmatmul.f32.gmra.mxu0 %v488
      %v600 = vpop.f32.mrf.mxu0
      %v601 = vadd.f32 0.0, %v600
      %602 = vmatmul.f32.gmra.mxu0 %v491
      %v603 = vpop.f32.mrf.mxu0
      %v604 = vadd.f32 0.0, %v603
      %605 = vmatmul.f32.gmra.mxu0 %v494
      %v606 = vpop.f32.mrf.mxu0
      %v607 = vadd.f32 0.0, %v606
      %608 = vmatmul.f32.gmra.mxu0 %v497
      %v609 = vpop.f32.mrf.mxu0
      %v610 = vadd.f32 0.0, %v609
      %611 = vmatmul.f32.gmra.mxu0 %v500
      %v612 = vpop.f32.mrf.mxu0
      %v613 = vadd.f32 0.0, %v612
      %614 = vmatmul.f32.gmra.mxu0 %v503
      %v615 = vpop.f32.mrf.mxu0
      %v616 = vadd.f32 0.0, %v615
      %617 = vmatmul.f32.gmra.mxu0 %v506
      %v618 = vpop.f32.mrf.mxu0
      %v619 = vadd.f32 0.0, %v618
      %620 = vmatmul.f32.gmra.mxu0 %v509
      %v621 = vpop.f32.mrf.mxu0
      %v622 = vadd.f32 0.0, %v621
      %623 = vmatmul.f32.gmra.mxu0 %v512
      %v624 = vpop.f32.mrf.mxu0
      %v625 = vadd.f32 0.0, %v624
      %626 = vmatmul.f32.gmra.mxu0 %v515
      %v627 = vpop.f32.mrf.mxu0
      %v628 = vadd.f32 0.0, %v627
      %629 = vmatmul.f32.gmra.mxu0 %v518
      %v630 = vpop.f32.mrf.mxu0
      %v631 = vadd.f32 0.0, %v630
      %632 = vmatmul.f32.gmra.mxu0 %v521
      %v633 = vpop.f32.mrf.mxu0
      %v634 = vadd.f32 0.0, %v633
      %635 = vmatmul.f32.gmra.mxu0 %v524
      %v636 = vpop.f32.mrf.mxu0
      %v637 = vadd.f32 0.0, %v636
      %638 = vmatmul.f32.gmra.mxu0 %v527
      %v639 = vpop.f32.mrf.mxu0
      %v640 = vadd.f32 0.0, %v639
      %641 = vmatmul.f32.gmra.mxu0 %v530
      %v642 = vpop.f32.mrf.mxu0
      %v643 = vadd.f32 0.0, %v642
      %644 = vmatmul.f32.gmra.mxu0 %v533
      %v645 = vpop.f32.mrf.mxu0
      %v646 = vadd.f32 0.0, %v645
      %647 = vmatmul.f32.gmra.mxu0 %v536
      %v648 = vpop.f32.mrf.mxu0
      %v649 = vadd.f32 0.0, %v648
      %650 = vmatmul.f32.gmra.mxu0 %v539
      %v651 = vpop.f32.mrf.mxu0
      %v652 = vadd.f32 0.0, %v651
      %653 = vmatmul.f32.gmra.mxu0 %v542
      %v654 = vpop.f32.mrf.mxu0
      %v655 = vadd.f32 0.0, %v654
      %656 = vmatmul.f32.gmra.mxu0 %v545
      %v657 = vpop.f32.mrf.mxu0
      %v658 = vadd.f32 0.0, %v657
      %659 = vmatmul.f32.gmra.mxu0 %v548
      %v660 = vpop.f32.mrf.mxu0
      %v661 = vadd.f32 0.0, %v660
      %662 = vmatmul.f32.gmra.mxu0 %v551
      %v663 = vpop.f32.mrf.mxu0
      %v664 = vadd.f32 0.0, %v663
      %665 = vmatmul.f32.gmra.mxu0 %v554
      %v666 = vpop.f32.mrf.mxu0
      %v667 = vadd.f32 0.0, %v666
      %668 = vmatmul.f32.gmra.mxu0 %v557
      %v669 = vpop.f32.mrf.mxu0
      %v670 = vadd.f32 0.0, %v669
      %671 = vmatmul.f32.gmra.mxu0 %v560
      %v672 = vpop.f32.mrf.mxu0
      %v673 = vadd.f32 0.0, %v672
      %674 = vmatmul.f32.gmra.mxu0 %v563
      %v675 = vpop.f32.mrf.mxu0
      %v676 = vadd.f32 0.0, %v675
      %677 = vmatmul.f32.gmra.mxu0 %v566
      %v678 = vpop.f32.mrf.mxu0
      %v679 = vadd.f32 0.0, %v678
      %680 = vmatmul.f32.gmra.mxu0 %v569
      %v681 = vpop.f32.mrf.mxu0
      %v682 = vadd.f32 0.0, %v681
      %683 = vdwg.mxu0
      %684 = vmatpush.msra.mxu0 0.0
      %685 = vmatpush.msra.mxu0 0.0
      %686 = vmatpush.msra.mxu0 0.0
      %687 = vmatpush.msra.mxu0 0.0
      %688 = vmatpush.msra.mxu0 0.0
      %689 = vmatpush.msra.mxu0 0.0
      %690 = vmatpush.msra.mxu0 0.0
      %691 = vmatpush.msra.mxu0 0.0
      %692 = vmatpush.msra.mxu0 0.0
      %693 = vmatpush.msra.mxu0 0.0
      %694 = vmatpush.msra.mxu0 0.0
      %695 = vmatpush.msra.mxu0 0.0
      %696 = vmatpush.msra.mxu0 0.0
      %697 = vmatpush.msra.mxu0 0.0
      %698 = vmatpush.msra.mxu0 0.0
      %699 = vmatpush.msra.mxu0 %v384
      %700 = vmatmul.f32.gmra.mxu0 %v476
      %v701 = vpop.f32.mrf.mxu0
      %v702 = vadd.f32 0.0, %v701
      %703 = vmatmul.f32.gmra.mxu0 %v479
      %v704 = vpop.f32.mrf.mxu0
      %v705 = vadd.f32 0.0, %v704
      %706 = vmatmul.f32.gmra.mxu0 %v482
      %v707 = vpop.f32.mrf.mxu0
      %v708 = vadd.f32 0.0, %v707
      %709 = vmatmul.f32.gmra.mxu0 %v485
      %v710 = vpop.f32.mrf.mxu0
      %v711 = vadd.f32 0.0, %v710
      %712 = vmatmul.f32.gmra.mxu0 %v488
      %v713 = vpop.f32.mrf.mxu0
      %v714 = vadd.f32 0.0, %v713
      %715 = vmatmul.f32.gmra.mxu0 %v491
      %v716 = vpop.f32.mrf.mxu0
      %v717 = vadd.f32 0.0, %v716
      %718 = vmatmul.f32.gmra.mxu0 %v494
      %v719 = vpop.f32.mrf.mxu0
      %v720 = vadd.f32 0.0, %v719
      %721 = vmatmul.f32.gmra.mxu0 %v497
      %v722 = vpop.f32.mrf.mxu0
      %v723 = vadd.f32 0.0, %v722
      %724 = vmatmul.f32.gmra.mxu0 %v500
      %v725 = vpop.f32.mrf.mxu0
      %v726 = vadd.f32 0.0, %v725
      %727 = vmatmul.f32.gmra.mxu0 %v503
      %v728 = vpop.f32.mrf.mxu0
      %v729 = vadd.f32 0.0, %v728
      %730 = vmatmul.f32.gmra.mxu0 %v506
      %v731 = vpop.f32.mrf.mxu0
      %v732 = vadd.f32 0.0, %v731
      %733 = vmatmul.f32.gmra.mxu0 %v509
      %v734 = vpop.f32.mrf.mxu0
      %v735 = vadd.f32 0.0, %v734
      %736 = vmatmul.f32.gmra.mxu0 %v512
      %v737 = vpop.f32.mrf.mxu0
      %v738 = vadd.f32 0.0, %v737
      %739 = vmatmul.f32.gmra.mxu0 %v515
      %v740 = vpop.f32.mrf.mxu0
      %v741 = vadd.f32 0.0, %v740
      %742 = vmatmul.f32.gmra.mxu0 %v518
      %v743 = vpop.f32.mrf.mxu0
      %v744 = vadd.f32 0.0, %v743
      %745 = vmatmul.f32.gmra.mxu0 %v521
      %v746 = vpop.f32.mrf.mxu0
      %v747 = vadd.f32 0.0, %v746
      %748 = vmatmul.f32.gmra.mxu0 %v524
      %v749 = vpop.f32.mrf.mxu0
      %v750 = vadd.f32 0.0, %v749
      %751 = vmatmul.f32.gmra.mxu0 %v527
      %v752 = vpop.f32.mrf.mxu0
      %v753 = vadd.f32 0.0, %v752
      %754 = vmatmul.f32.gmra.mxu0 %v530
      %v755 = vpop.f32.mrf.mxu0
      %v756 = vadd.f32 0.0, %v755
      %757 = vmatmul.f32.gmra.mxu0 %v533
      %v758 = vpop.f32.mrf.mxu0
      %v759 = vadd.f32 0.0, %v758
      %760 = vmatmul.f32.gmra.mxu0 %v536
      %v761 = vpop.f32.mrf.mxu0
      %v762 = vadd.f32 0.0, %v761
      %763 = vmatmul.f32.gmra.mxu0 %v539
      %v764 = vpop.f32.mrf.mxu0
      %v765 = vadd.f32 0.0, %v764
      %766 = vmatmul.f32.gmra.mxu0 %v542
      %v767 = vpop.f32.mrf.mxu0
      %v768 = vadd.f32 0.0, %v767
      %769 = vmatmul.f32.gmra.mxu0 %v545
      %v770 = vpop.f32.mrf.mxu0
      %v771 = vadd.f32 0.0, %v770
      %772 = vmatmul.f32.gmra.mxu0 %v548
      %v773 = vpop.f32.mrf.mxu0
      %v774 = vadd.f32 0.0, %v773
      %775 = vmatmul.f32.gmra.mxu0 %v551
      %v776 = vpop.f32.mrf.mxu0
      %v777 = vadd.f32 0.0, %v776
      %778 = vmatmul.f32.gmra.mxu0 %v554
      %v779 = vpop.f32.mrf.mxu0
      %v780 = vadd.f32 0.0, %v779
      %781 = vmatmul.f32.gmra.mxu0 %v557
      %v782 = vpop.f32.mrf.mxu0
      %v783 = vadd.f32 0.0, %v782
      %784 = vmatmul.f32.gmra.mxu0 %v560
      %v785 = vpop.f32.mrf.mxu0
      %v786 = vadd.f32 0.0, %v785
      %787 = vmatmul.f32.gmra.mxu0 %v563
      %v788 = vpop.f32.mrf.mxu0
      %v789 = vadd.f32 0.0, %v788
      %790 = vmatmul.f32.gmra.mxu0 %v566
      %v791 = vpop.f32.mrf.mxu0
      %v792 = vadd.f32 0.0, %v791
      %793 = vmatmul.f32.gmra.mxu0 %v569
      %v794 = vpop.f32.mrf.mxu0
      %v795 = vadd.f32 0.0, %v794
      %796 = vdwg.mxu0
      %v797 = vmax.f32 %v589, %v702
      %798 = vmax.xlane.f32.xlu0 %v797
      %v799 = vpop.xlane.xlu0 %798
      %v800 = vmax.f32 %v592, %v705
      %801 = vmax.xlane.f32.xlu0 %v800
      %v802 = vpop.xlane.xlu0 %801
      %v803 = vmax.f32 %v595, %v708
      %804 = vmax.xlane.f32.xlu0 %v803
      %v805 = vpop.xlane.xlu0 %804
      %v806 = vmax.f32 %v598, %v711
      %807 = vmax.xlane.f32.xlu0 %v806
      %v808 = vpop.xlane.xlu0 %807
      %v809 = vmax.f32 %v601, %v714
      %810 = vmax.xlane.f32.xlu0 %v809
      %v811 = vpop.xlane.xlu0 %810
      %v812 = vmax.f32 %v604, %v717
      %813 = vmax.xlane.f32.xlu0 %v812
      %v814 = vpop.xlane.xlu0 %813
      %v815 = vmax.f32 %v607, %v720
      %816 = vmax.xlane.f32.xlu0 %v815
      %v817 = vpop.xlane.xlu0 %816
      %v818 = vmax.f32 %v610, %v723
      %819 = vmax.xlane.f32.xlu0 %v818
      %v820 = vpop.xlane.xlu0 %819
      %v821 = vmax.f32 %v613, %v726
      %822 = vmax.xlane.f32.xlu0 %v821
      %v823 = vpop.xlane.xlu0 %822
      %v824 = vmax.f32 %v616, %v729
      %825 = vmax.xlane.f32.xlu0 %v824
      %v826 = vpop.xlane.xlu0 %825
      %v827 = vmax.f32 %v619, %v732
      %828 = vmax.xlane.f32.xlu0 %v827
      %v829 = vpop.xlane.xlu0 %828
      %v830 = vmax.f32 %v622, %v735
      %831 = vmax.xlane.f32.xlu0 %v830
      %v832 = vpop.xlane.xlu0 %831
      %v833 = vmax.f32 %v625, %v738
      %834 = vmax.xlane.f32.xlu0 %v833
      %v835 = vpop.xlane.xlu0 %834
      %v836 = vmax.f32 %v628, %v741
      %837 = vmax.xlane.f32.xlu0 %v836
      %v838 = vpop.xlane.xlu0 %837
      %v839 = vmax.f32 %v631, %v744
      %840 = vmax.xlane.f32.xlu0 %v839
      %v841 = vpop.xlane.xlu0 %840
      %v842 = vmax.f32 %v634, %v747
      %843 = vmax.xlane.f32.xlu0 %v842
      %v844 = vpop.xlane.xlu0 %843
      %v845 = vmax.f32 %v637, %v750
      %846 = vmax.xlane.f32.xlu0 %v845
      %v847 = vpop.xlane.xlu0 %846
      %v848 = vmax.f32 %v640, %v753
      %849 = vmax.xlane.f32.xlu0 %v848
      %v850 = vpop.xlane.xlu0 %849
      %v851 = vmax.f32 %v643, %v756
      %852 = vmax.xlane.f32.xlu0 %v851
      %v853 = vpop.xlane.xlu0 %852
      %v854 = vmax.f32 %v646, %v759
      %855 = vmax.xlane.f32.xlu0 %v854
      %v856 = vpop.xlane.xlu0 %855
      %v857 = vmax.f32 %v649, %v762
      %858 = vmax.xlane.f32.xlu0 %v857
      %v859 = vpop.xlane.xlu0 %858
      %v860 = vmax.f32 %v652, %v765
      %861 = vmax.xlane.f32.xlu0 %v860
      %v862 = vpop.xlane.xlu0 %861
      %v863 = vmax.f32 %v655, %v768
      %864 = vmax.xlane.f32.xlu0 %v863
      %v865 = vpop.xlane.xlu0 %864
      %v866 = vmax.f32 %v658, %v771
      %867 = vmax.xlane.f32.xlu0 %v866
      %v868 = vpop.xlane.xlu0 %867
      %v869 = vmax.f32 %v661, %v774
      %870 = vmax.xlane.f32.xlu0 %v869
      %v871 = vpop.xlane.xlu0 %870
      %v872 = vmax.f32 %v664, %v777
      %873 = vmax.xlane.f32.xlu0 %v872
      %v874 = vpop.xlane.xlu0 %873
      %v875 = vmax.f32 %v667, %v780
      %876 = vmax.xlane.f32.xlu0 %v875
      %v877 = vpop.xlane.xlu0 %876
      %v878 = vmax.f32 %v670, %v783
      %879 = vmax.xlane.f32.xlu0 %v878
      %v880 = vpop.xlane.xlu0 %879
      %v881 = vmax.f32 %v673, %v786
      %882 = vmax.xlane.f32.xlu0 %v881
      %v883 = vpop.xlane.xlu0 %882
      %v884 = vmax.f32 %v676, %v789
      %885 = vmax.xlane.f32.xlu0 %v884
      %v886 = vpop.xlane.xlu0 %885
      %v887 = vmax.f32 %v679, %v792
      %888 = vmax.xlane.f32.xlu0 %v887
      %v889 = vpop.xlane.xlu0 %888
      %v890 = vmax.f32 %v682, %v795
      %891 = vmax.xlane.f32.xlu0 %v890
      %v892 = vpop.xlane.xlu0 %891
      %v893 = vsub.f32 %v589, %v799
      %v894 = vsub.f32 %v702, %v799
      %v895 = vsub.f32 %v592, %v802
      %v896 = vsub.f32 %v705, %v802
      %v897 = vsub.f32 %v595, %v805
      %v898 = vsub.f32 %v708, %v805
      %v899 = vsub.f32 %v598, %v808
      %v900 = vsub.f32 %v711, %v808
      %v901 = vsub.f32 %v601, %v811
      %v902 = vsub.f32 %v714, %v811
      %v903 = vsub.f32 %v604, %v814
      %v904 = vsub.f32 %v717, %v814
      %v905 = vsub.f32 %v607, %v817
      %v906 = vsub.f32 %v720, %v817
      %v907 = vsub.f32 %v610, %v820
      %v908 = vsub.f32 %v723, %v820
      %v909 = vsub.f32 %v613, %v823
      %v910 = vsub.f32 %v726, %v823
      %v911 = vsub.f32 %v616, %v826
      %v912 = vsub.f32 %v729, %v826
      %v913 = vsub.f32 %v619, %v829
      %v914 = vsub.f32 %v732, %v829
      %v915 = vsub.f32 %v622, %v832
      %v916 = vsub.f32 %v735, %v832
      %v917 = vsub.f32 %v625, %v835
      %v918 = vsub.f32 %v738, %v835
      %v919 = vsub.f32 %v628, %v838
      %v920 = vsub.f32 %v741, %v838
      %v921 = vsub.f32 %v631, %v841
      %v922 = vsub.f32 %v744, %v841
      %v923 = vsub.f32 %v634, %v844
      %v924 = vsub.f32 %v747, %v844
      %v925 = vsub.f32 %v637, %v847
      %v926 = vsub.f32 %v750, %v847
      %v927 = vsub.f32 %v640, %v850
      %v928 = vsub.f32 %v753, %v850
      %v929 = vsub.f32 %v643, %v853
      %v930 = vsub.f32 %v756, %v853
      %v931 = vsub.f32 %v646, %v856
      %v932 = vsub.f32 %v759, %v856
      %v933 = vsub.f32 %v649, %v859
      %v934 = vsub.f32 %v762, %v859
      %v935 = vsub.f32 %v652, %v862
      %v936 = vsub.f32 %v765, %v862
      %v937 = vsub.f32 %v655, %v865
      %v938 = vsub.f32 %v768, %v865
      %v939 = vsub.f32 %v658, %v868
      %v940 = vsub.f32 %v771, %v868
      %v941 = vsub.f32 %v661, %v871
      %v942 = vsub.f32 %v774, %v871
      %v943 = vsub.f32 %v664, %v874
      %v944 = vsub.f32 %v777, %v874
      %v945 = vsub.f32 %v667, %v877
      %v946 = vsub.f32 %v780, %v877
      %v947 = vsub.f32 %v670, %v880
      %v948 = vsub.f32 %v783, %v880
      %v949 = vsub.f32 %v673, %v883
      %v950 = vsub.f32 %v786, %v883
      %v951 = vsub.f32 %v676, %v886
      %v952 = vsub.f32 %v789, %v886
      %v953 = vsub.f32 %v679, %v889
      %v954 = vsub.f32 %v792, %v889
      %v955 = vsub.f32 %v682, %v892
      %v956 = vsub.f32 %v795, %v892
      %v957 = vmul.f32 %v893, 1.442695
      %v958 = vpow.pop %v957
      %v959 = vmul.f32 %v894, 1.442695
      %v960 = vpow.pop %v959
      %v961 = vmul.f32 %v895, 1.442695
      %v962 = vpow.pop %v961
      %v963 = vmul.f32 %v896, 1.442695
      %v964 = vpow.pop %v963
      %v965 = vmul.f32 %v897, 1.442695
      %v966 = vpow.pop %v965
      %v967 = vmul.f32 %v898, 1.442695
      %v968 = vpow.pop %v967
      %v969 = vmul.f32 %v899, 1.442695
      %v970 = vpow.pop %v969
      %v971 = vmul.f32 %v900, 1.442695
      %v972 = vpow.pop %v971
      %v973 = vmul.f32 %v901, 1.442695
      %v974 = vpow.pop %v973
      %v975 = vmul.f32 %v902, 1.442695
      %v976 = vpow.pop %v975
      %v977 = vmul.f32 %v903, 1.442695
      %v978 = vpow.pop %v977
      %v979 = vmul.f32 %v904, 1.442695
      %v980 = vpow.pop %v979
      %v981 = vmul.f32 %v905, 1.442695
      %v982 = vpow.pop %v981
      %v983 = vmul.f32 %v906, 1.442695
      %v984 = vpow.pop %v983
      %v985 = vmul.f32 %v907, 1.442695
      %v986 = vpow.pop %v985
      %v987 = vmul.f32 %v908, 1.442695
      %v988 = vpow.pop %v987
      %v989 = vmul.f32 %v909, 1.442695
      %v990 = vpow.pop %v989
      %v991 = vmul.f32 %v910, 1.442695
      %v992 = vpow.pop %v991
      %v993 = vmul.f32 %v911, 1.442695
      %v994 = vpow.pop %v993
      %v995 = vmul.f32 %v912, 1.442695
      %v996 = vpow.pop %v995
      %v997 = vmul.f32 %v913, 1.442695
      %v998 = vpow.pop %v997
      %v999 = vmul.f32 %v914, 1.442695
      %v1000 = vpow.pop %v999
      %v1001 = vmul.f32 %v915, 1.442695
      %v1002 = vpow.pop %v1001
      %v1003 = vmul.f32 %v916, 1.442695
      %v1004 = vpow.pop %v1003
      %v1005 = vmul.f32 %v917, 1.442695
      %v1006 = vpow.pop %v1005
      %v1007 = vmul.f32 %v918, 1.442695
      %v1008 = vpow.pop %v1007
      %v1009 = vmul.f32 %v919, 1.442695
      %v1010 = vpow.pop %v1009
      %v1011 = vmul.f32 %v920, 1.442695
      %v1012 = vpow.pop %v1011
      %v1013 = vmul.f32 %v921, 1.442695
      %v1014 = vpow.pop %v1013
      %v1015 = vmul.f32 %v922, 1.442695
      %v1016 = vpow.pop %v1015
      %v1017 = vmul.f32 %v923, 1.442695
      %v1018 = vpow.pop %v1017
      %v1019 = vmul.f32 %v924, 1.442695
      %v1020 = vpow.pop %v1019
      %v1021 = vmul.f32 %v925, 1.442695
      %v1022 = vpow.pop %v1021
      %v1023 = vmul.f32 %v926, 1.442695
      %v1024 = vpow.pop %v1023
      %v1025 = vmul.f32 %v927, 1.442695
      %v1026 = vpow.pop %v1025
      %v1027 = vmul.f32 %v928, 1.442695
      %v1028 = vpow.pop %v1027
      %v1029 = vmul.f32 %v929, 1.442695
      %v1030 = vpow.pop %v1029
      %v1031 = vmul.f32 %v930, 1.442695
      %v1032 = vpow.pop %v1031
      %v1033 = vmul.f32 %v931, 1.442695
      %v1034 = vpow.pop %v1033
      %v1035 = vmul.f32 %v932, 1.442695
      %v1036 = vpow.pop %v1035
      %v1037 = vmul.f32 %v933, 1.442695
      %v1038 = vpow.pop %v1037
      %v1039 = vmul.f32 %v934, 1.442695
      %v1040 = vpow.pop %v1039
      %v1041 = vmul.f32 %v935, 1.442695
      %v1042 = vpow.pop %v1041
      %v1043 = vmul.f32 %v936, 1.442695
      %v1044 = vpow.pop %v1043
      %v1045 = vmul.f32 %v937, 1.442695
      %v1046 = vpow.pop %v1045
      %v1047 = vmul.f32 %v938, 1.442695
      %v1048 = vpow.pop %v1047
      %v1049 = vmul.f32 %v939, 1.442695
      %v1050 = vpow.pop %v1049
      %v1051 = vmul.f32 %v940, 1.442695
      %v1052 = vpow.pop %v1051
      %v1053 = vmul.f32 %v941, 1.442695
      %v1054 = vpow.pop %v1053
      %v1055 = vmul.f32 %v942, 1.442695
      %v1056 = vpow.pop %v1055
      %v1057 = vmul.f32 %v943, 1.442695
      %v1058 = vpow.pop %v1057
      %v1059 = vmul.f32 %v944, 1.442695
      %v1060 = vpow.pop %v1059
      %v1061 = vmul.f32 %v945, 1.442695
      %v1062 = vpow.pop %v1061
      %v1063 = vmul.f32 %v946, 1.442695
      %v1064 = vpow.pop %v1063
      %v1065 = vmul.f32 %v947, 1.442695
      %v1066 = vpow.pop %v1065
      %v1067 = vmul.f32 %v948, 1.442695
      %v1068 = vpow.pop %v1067
      %v1069 = vmul.f32 %v949, 1.442695
      %v1070 = vpow.pop %v1069
      %v1071 = vmul.f32 %v950, 1.442695
      %v1072 = vpow.pop %v1071
      %v1073 = vmul.f32 %v951, 1.442695
      %v1074 = vpow.pop %v1073
      %v1075 = vmul.f32 %v952, 1.442695
      %v1076 = vpow.pop %v1075
      %v1077 = vmul.f32 %v953, 1.442695
      %v1078 = vpow.pop %v1077
      %v1079 = vmul.f32 %v954, 1.442695
      %v1080 = vpow.pop %v1079
      %v1081 = vmul.f32 %v955, 1.442695
      %v1082 = vpow.pop %v1081
      %v1083 = vmul.f32 %v956, 1.442695
      %v1084 = vpow.pop %v1083
      %v1085 = vadd.f32 %v958, %v960
      %1086 = vadd.xlane.f32.xlu0 %v1085
      %v1087 = vpop.xlane.xlu0 %1086
      %v1088 = vadd.f32 %v962, %v964
      %1089 = vadd.xlane.f32.xlu0 %v1088
      %v1090 = vpop.xlane.xlu0 %1089
      %v1091 = vadd.f32 %v966, %v968
      %1092 = vadd.xlane.f32.xlu0 %v1091
      %v1093 = vpop.xlane.xlu0 %1092
      %v1094 = vadd.f32 %v970, %v972
      %1095 = vadd.xlane.f32.xlu0 %v1094
      %v1096 = vpop.xlane.xlu0 %1095
      %v1097 = vadd.f32 %v974, %v976
      %1098 = vadd.xlane.f32.xlu0 %v1097
      %v1099 = vpop.xlane.xlu0 %1098
      %v1100 = vadd.f32 %v978, %v980
      %1101 = vadd.xlane.f32.xlu0 %v1100
      %v1102 = vpop.xlane.xlu0 %1101
      %v1103 = vadd.f32 %v982, %v984
      %1104 = vadd.xlane.f32.xlu0 %v1103
      %v1105 = vpop.xlane.xlu0 %1104
      %v1106 = vadd.f32 %v986, %v988
      %1107 = vadd.xlane.f32.xlu0 %v1106
      %v1108 = vpop.xlane.xlu0 %1107
      %v1109 = vadd.f32 %v990, %v992
      %1110 = vadd.xlane.f32.xlu0 %v1109
      %v1111 = vpop.xlane.xlu0 %1110
      %v1112 = vadd.f32 %v994, %v996
      %1113 = vadd.xlane.f32.xlu0 %v1112
      %v1114 = vpop.xlane.xlu0 %1113
      %v1115 = vadd.f32 %v998, %v1000
      %1116 = vadd.xlane.f32.xlu0 %v1115
      %v1117 = vpop.xlane.xlu0 %1116
      %v1118 = vadd.f32 %v1002, %v1004
      %1119 = vadd.xlane.f32.xlu0 %v1118
      %v1120 = vpop.xlane.xlu0 %1119
      %v1121 = vadd.f32 %v1006, %v1008
      %1122 = vadd.xlane.f32.xlu0 %v1121
      %v1123 = vpop.xlane.xlu0 %1122
      %v1124 = vadd.f32 %v1010, %v1012
      %1125 = vadd.xlane.f32.xlu0 %v1124
      %v1126 = vpop.xlane.xlu0 %1125
      %v1127 = vadd.f32 %v1014, %v1016
      %1128 = vadd.xlane.f32.xlu0 %v1127
      %v1129 = vpop.xlane.xlu0 %1128
      %v1130 = vadd.f32 %v1018, %v1020
      %1131 = vadd.xlane.f32.xlu0 %v1130
      %v1132 = vpop.xlane.xlu0 %1131
      %v1133 = vadd.f32 %v1022, %v1024
      %1134 = vadd.xlane.f32.xlu0 %v1133
      %v1135 = vpop.xlane.xlu0 %1134
      %v1136 = vadd.f32 %v1026, %v1028
      %1137 = vadd.xlane.f32.xlu0 %v1136
      %v1138 = vpop.xlane.xlu0 %1137
      %v1139 = vadd.f32 %v1030, %v1032
      %1140 = vadd.xlane.f32.xlu0 %v1139
      %v1141 = vpop.xlane.xlu0 %1140
      %v1142 = vadd.f32 %v1034, %v1036
      %1143 = vadd.xlane.f32.xlu0 %v1142
      %v1144 = vpop.xlane.xlu0 %1143
      %v1145 = vadd.f32 %v1038, %v1040
      %1146 = vadd.xlane.f32.xlu0 %v1145
      %v1147 = vpop.xlane.xlu0 %1146
      %v1148 = vadd.f32 %v1042, %v1044
      %1149 = vadd.xlane.f32.xlu0 %v1148
      %v1150 = vpop.xlane.xlu0 %1149
      %v1151 = vadd.f32 %v1046, %v1048
      %1152 = vadd.xlane.f32.xlu0 %v1151
      %v1153 = vpop.xlane.xlu0 %1152
      %v1154 = vadd.f32 %v1050, %v1052
      %1155 = vadd.xlane.f32.xlu0 %v1154
      %v1156 = vpop.xlane.xlu0 %1155
      %v1157 = vadd.f32 %v1054, %v1056
      %1158 = vadd.xlane.f32.xlu0 %v1157
      %v1159 = vpop.xlane.xlu0 %1158
      %v1160 = vadd.f32 %v1058, %v1060
      %1161 = vadd.xlane.f32.xlu0 %v1160
      %v1162 = vpop.xlane.xlu0 %1161
      %v1163 = vadd.f32 %v1062, %v1064
      %1164 = vadd.xlane.f32.xlu0 %v1163
      %v1165 = vpop.xlane.xlu0 %1164
      %v1166 = vadd.f32 %v1066, %v1068
      %1167 = vadd.xlane.f32.xlu0 %v1166
      %v1168 = vpop.xlane.xlu0 %1167
      %v1169 = vadd.f32 %v1070, %v1072
      %1170 = vadd.xlane.f32.xlu0 %v1169
      %v1171 = vpop.xlane.xlu0 %1170
      %v1172 = vadd.f32 %v1074, %v1076
      %1173 = vadd.xlane.f32.xlu0 %v1172
      %v1174 = vpop.xlane.xlu0 %1173
      %v1175 = vadd.f32 %v1078, %v1080
      %1176 = vadd.xlane.f32.xlu0 %v1175
      %v1177 = vpop.xlane.xlu0 %1176
      %v1178 = vadd.f32 %v1082, %v1084
      %1179 = vadd.xlane.f32.xlu0 %v1178
      %v1180 = vpop.xlane.xlu0 %1179
      %v1181 = vrcp.pop %v1087
      %v1182 = vmul.f32 %v1087, %v1181
      %v1183 = vsub.f32 1.0, %v1182
      %v1184 = vmul.f32 %v1181, %v1183
      %v1185 = vadd.f32 %v1181, %v1184
      %vm1186 = vweird.f32 %v1087
      %vm1187 = vweird.f32 %v1181
      %vm1188 = vmor %vm1186, %vm1187
      %v1189 = vsel %vm1188, %v1181, %v1185
      %v1190 = vand.u32 2147483647, %v1087
      %vm1191 = vcmp.eq.f32.partialorder %v1190, 8.507059e+37
      %v1192 = vand.u32 %v1087, 2147483648
      %v1193 = vor.u32 1.1754944e-38, %v1192
      %v1194 = vsel %vm1191, %v1193, %v1189
      %v1195 = vrcp.pop %v1090
      %v1196 = vmul.f32 %v1090, %v1195
      %v1197 = vsub.f32 1.0, %v1196
      %v1198 = vmul.f32 %v1195, %v1197
      %v1199 = vadd.f32 %v1195, %v1198
      %vm1200 = vweird.f32 %v1090
      %vm1201 = vweird.f32 %v1195
      %vm1202 = vmor %vm1200, %vm1201
      %v1203 = vsel %vm1202, %v1195, %v1199
      %v1204 = vand.u32 2147483647, %v1090
      %vm1205 = vcmp.eq.f32.partialorder %v1204, 8.507059e+37
      %v1206 = vand.u32 %v1090, 2147483648
      %v1207 = vor.u32 1.1754944e-38, %v1206
      %v1208 = vsel %vm1205, %v1207, %v1203
      %v1209 = vrcp.pop %v1093
      %v1210 = vmul.f32 %v1093, %v1209
      %v1211 = vsub.f32 1.0, %v1210
      %v1212 = vmul.f32 %v1209, %v1211
      %v1213 = vadd.f32 %v1209, %v1212
      %vm1214 = vweird.f32 %v1093
      %vm1215 = vweird.f32 %v1209
      %vm1216 = vmor %vm1214, %vm1215
      %v1217 = vsel %vm1216, %v1209, %v1213
      %v1218 = vand.u32 2147483647, %v1093
      %vm1219 = vcmp.eq.f32.partialorder %v1218, 8.507059e+37
      %v1220 = vand.u32 %v1093, 2147483648
      %v1221 = vor.u32 1.1754944e-38, %v1220
      %v1222 = vsel %vm1219, %v1221, %v1217
      %v1223 = vrcp.pop %v1096
      %v1224 = vmul.f32 %v1096, %v1223
      %v1225 = vsub.f32 1.0, %v1224
      %v1226 = vmul.f32 %v1223, %v1225
      %v1227 = vadd.f32 %v1223, %v1226
      %vm1228 = vweird.f32 %v1096
      %vm1229 = vweird.f32 %v1223
      %vm1230 = vmor %vm1228, %vm1229
      %v1231 = vsel %vm1230, %v1223, %v1227
      %v1232 = vand.u32 2147483647, %v1096
      %vm1233 = vcmp.eq.f32.partialorder %v1232, 8.507059e+37
      %v1234 = vand.u32 %v1096, 2147483648
      %v1235 = vor.u32 1.1754944e-38, %v1234
      %v1236 = vsel %vm1233, %v1235, %v1231
      %v1237 = vrcp.pop %v1099
      %v1238 = vmul.f32 %v1099, %v1237
      %v1239 = vsub.f32 1.0, %v1238
      %v1240 = vmul.f32 %v1237, %v1239
      %v1241 = vadd.f32 %v1237, %v1240
      %vm1242 = vweird.f32 %v1099
      %vm1243 = vweird.f32 %v1237
      %vm1244 = vmor %vm1242, %vm1243
      %v1245 = vsel %vm1244, %v1237, %v1241
      %v1246 = vand.u32 2147483647, %v1099
      %vm1247 = vcmp.eq.f32.partialorder %v1246, 8.507059e+37
      %v1248 = vand.u32 %v1099, 2147483648
      %v1249 = vor.u32 1.1754944e-38, %v1248
      %v1250 = vsel %vm1247, %v1249, %v1245
      %v1251 = vrcp.pop %v1102
      %v1252 = vmul.f32 %v1102, %v1251
      %v1253 = vsub.f32 1.0, %v1252
      %v1254 = vmul.f32 %v1251, %v1253
      %v1255 = vadd.f32 %v1251, %v1254
      %vm1256 = vweird.f32 %v1102
      %vm1257 = vweird.f32 %v1251
      %vm1258 = vmor %vm1256, %vm1257
      %v1259 = vsel %vm1258, %v1251, %v1255
      %v1260 = vand.u32 2147483647, %v1102
      %vm1261 = vcmp.eq.f32.partialorder %v1260, 8.507059e+37
      %v1262 = vand.u32 %v1102, 2147483648
      %v1263 = vor.u32 1.1754944e-38, %v1262
      %v1264 = vsel %vm1261, %v1263, %v1259
      %v1265 = vrcp.pop %v1105
      %v1266 = vmul.f32 %v1105, %v1265
      %v1267 = vsub.f32 1.0, %v1266
      %v1268 = vmul.f32 %v1265, %v1267
      %v1269 = vadd.f32 %v1265, %v1268
      %vm1270 = vweird.f32 %v1105
      %vm1271 = vweird.f32 %v1265
      %vm1272 = vmor %vm1270, %vm1271
      %v1273 = vsel %vm1272, %v1265, %v1269
      %v1274 = vand.u32 2147483647, %v1105
      %vm1275 = vcmp.eq.f32.partialorder %v1274, 8.507059e+37
      %v1276 = vand.u32 %v1105, 2147483648
      %v1277 = vor.u32 1.1754944e-38, %v1276
      %v1278 = vsel %vm1275, %v1277, %v1273
      %v1279 = vrcp.pop %v1108
      %v1280 = vmul.f32 %v1108, %v1279
      %v1281 = vsub.f32 1.0, %v1280
      %v1282 = vmul.f32 %v1279, %v1281
      %v1283 = vadd.f32 %v1279, %v1282
      %vm1284 = vweird.f32 %v1108
      %vm1285 = vweird.f32 %v1279
      %vm1286 = vmor %vm1284, %vm1285
      %v1287 = vsel %vm1286, %v1279, %v1283
      %v1288 = vand.u32 2147483647, %v1108
      %vm1289 = vcmp.eq.f32.partialorder %v1288, 8.507059e+37
      %v1290 = vand.u32 %v1108, 2147483648
      %v1291 = vor.u32 1.1754944e-38, %v1290
      %v1292 = vsel %vm1289, %v1291, %v1287
      %v1293 = vrcp.pop %v1111
      %v1294 = vmul.f32 %v1111, %v1293
      %v1295 = vsub.f32 1.0, %v1294
      %v1296 = vmul.f32 %v1293, %v1295
      %v1297 = vadd.f32 %v1293, %v1296
      %vm1298 = vweird.f32 %v1111
      %vm1299 = vweird.f32 %v1293
      %vm1300 = vmor %vm1298, %vm1299
      %v1301 = vsel %vm1300, %v1293, %v1297
      %v1302 = vand.u32 2147483647, %v1111
      %vm1303 = vcmp.eq.f32.partialorder %v1302, 8.507059e+37
      %v1304 = vand.u32 %v1111, 2147483648
      %v1305 = vor.u32 1.1754944e-38, %v1304
      %v1306 = vsel %vm1303, %v1305, %v1301
      %v1307 = vrcp.pop %v1114
      %v1308 = vmul.f32 %v1114, %v1307
      %v1309 = vsub.f32 1.0, %v1308
      %v1310 = vmul.f32 %v1307, %v1309
      %v1311 = vadd.f32 %v1307, %v1310
      %vm1312 = vweird.f32 %v1114
      %vm1313 = vweird.f32 %v1307
      %vm1314 = vmor %vm1312, %vm1313
      %v1315 = vsel %vm1314, %v1307, %v1311
      %v1316 = vand.u32 2147483647, %v1114
      %vm1317 = vcmp.eq.f32.partialorder %v1316, 8.507059e+37
      %v1318 = vand.u32 %v1114, 2147483648
      %v1319 = vor.u32 1.1754944e-38, %v1318
      %v1320 = vsel %vm1317, %v1319, %v1315
      %v1321 = vrcp.pop %v1117
      %v1322 = vmul.f32 %v1117, %v1321
      %v1323 = vsub.f32 1.0, %v1322
      %v1324 = vmul.f32 %v1321, %v1323
      %v1325 = vadd.f32 %v1321, %v1324
      %vm1326 = vweird.f32 %v1117
      %vm1327 = vweird.f32 %v1321
      %vm1328 = vmor %vm1326, %vm1327
      %v1329 = vsel %vm1328, %v1321, %v1325
      %v1330 = vand.u32 2147483647, %v1117
      %vm1331 = vcmp.eq.f32.partialorder %v1330, 8.507059e+37
      %v1332 = vand.u32 %v1117, 2147483648
      %v1333 = vor.u32 1.1754944e-38, %v1332
      %v1334 = vsel %vm1331, %v1333, %v1329
      %v1335 = vrcp.pop %v1120
      %v1336 = vmul.f32 %v1120, %v1335
      %v1337 = vsub.f32 1.0, %v1336
      %v1338 = vmul.f32 %v1335, %v1337
      %v1339 = vadd.f32 %v1335, %v1338
      %vm1340 = vweird.f32 %v1120
      %vm1341 = vweird.f32 %v1335
      %vm1342 = vmor %vm1340, %vm1341
      %v1343 = vsel %vm1342, %v1335, %v1339
      %v1344 = vand.u32 2147483647, %v1120
      %vm1345 = vcmp.eq.f32.partialorder %v1344, 8.507059e+37
      %v1346 = vand.u32 %v1120, 2147483648
      %v1347 = vor.u32 1.1754944e-38, %v1346
      %v1348 = vsel %vm1345, %v1347, %v1343
      %v1349 = vrcp.pop %v1123
      %v1350 = vmul.f32 %v1123, %v1349
      %v1351 = vsub.f32 1.0, %v1350
      %v1352 = vmul.f32 %v1349, %v1351
      %v1353 = vadd.f32 %v1349, %v1352
      %vm1354 = vweird.f32 %v1123
      %vm1355 = vweird.f32 %v1349
      %vm1356 = vmor %vm1354, %vm1355
      %v1357 = vsel %vm1356, %v1349, %v1353
      %v1358 = vand.u32 2147483647, %v1123
      %vm1359 = vcmp.eq.f32.partialorder %v1358, 8.507059e+37
      %v1360 = vand.u32 %v1123, 2147483648
      %v1361 = vor.u32 1.1754944e-38, %v1360
      %v1362 = vsel %vm1359, %v1361, %v1357
      %v1363 = vrcp.pop %v1126
      %v1364 = vmul.f32 %v1126, %v1363
      %v1365 = vsub.f32 1.0, %v1364
      %v1366 = vmul.f32 %v1363, %v1365
      %v1367 = vadd.f32 %v1363, %v1366
      %vm1368 = vweird.f32 %v1126
      %vm1369 = vweird.f32 %v1363
      %vm1370 = vmor %vm1368, %vm1369
      %v1371 = vsel %vm1370, %v1363, %v1367
      %v1372 = vand.u32 2147483647, %v1126
      %vm1373 = vcmp.eq.f32.partialorder %v1372, 8.507059e+37
      %v1374 = vand.u32 %v1126, 2147483648
      %v1375 = vor.u32 1.1754944e-38, %v1374
      %v1376 = vsel %vm1373, %v1375, %v1371
      %v1377 = vrcp.pop %v1129
      %v1378 = vmul.f32 %v1129, %v1377
      %v1379 = vsub.f32 1.0, %v1378
      %v1380 = vmul.f32 %v1377, %v1379
      %v1381 = vadd.f32 %v1377, %v1380
      %vm1382 = vweird.f32 %v1129
      %vm1383 = vweird.f32 %v1377
      %vm1384 = vmor %vm1382, %vm1383
      %v1385 = vsel %vm1384, %v1377, %v1381
      %v1386 = vand.u32 2147483647, %v1129
      %vm1387 = vcmp.eq.f32.partialorder %v1386, 8.507059e+37
      %v1388 = vand.u32 %v1129, 2147483648
      %v1389 = vor.u32 1.1754944e-38, %v1388
      %v1390 = vsel %vm1387, %v1389, %v1385
      %v1391 = vrcp.pop %v1132
      %v1392 = vmul.f32 %v1132, %v1391
      %v1393 = vsub.f32 1.0, %v1392
      %v1394 = vmul.f32 %v1391, %v1393
      %v1395 = vadd.f32 %v1391, %v1394
      %vm1396 = vweird.f32 %v1132
      %vm1397 = vweird.f32 %v1391
      %vm1398 = vmor %vm1396, %vm1397
      %v1399 = vsel %vm1398, %v1391, %v1395
      %v1400 = vand.u32 2147483647, %v1132
      %vm1401 = vcmp.eq.f32.partialorder %v1400, 8.507059e+37
      %v1402 = vand.u32 %v1132, 2147483648
      %v1403 = vor.u32 1.1754944e-38, %v1402
      %v1404 = vsel %vm1401, %v1403, %v1399
      %v1405 = vrcp.pop %v1135
      %v1406 = vmul.f32 %v1135, %v1405
      %v1407 = vsub.f32 1.0, %v1406
      %v1408 = vmul.f32 %v1405, %v1407
      %v1409 = vadd.f32 %v1405, %v1408
      %vm1410 = vweird.f32 %v1135
      %vm1411 = vweird.f32 %v1405
      %vm1412 = vmor %vm1410, %vm1411
      %v1413 = vsel %vm1412, %v1405, %v1409
      %v1414 = vand.u32 2147483647, %v1135
      %vm1415 = vcmp.eq.f32.partialorder %v1414, 8.507059e+37
      %v1416 = vand.u32 %v1135, 2147483648
      %v1417 = vor.u32 1.1754944e-38, %v1416
      %v1418 = vsel %vm1415, %v1417, %v1413
      %v1419 = vrcp.pop %v1138
      %v1420 = vmul.f32 %v1138, %v1419
      %v1421 = vsub.f32 1.0, %v1420
      %v1422 = vmul.f32 %v1419, %v1421
      %v1423 = vadd.f32 %v1419, %v1422
      %vm1424 = vweird.f32 %v1138
      %vm1425 = vweird.f32 %v1419
      %vm1426 = vmor %vm1424, %vm1425
      %v1427 = vsel %vm1426, %v1419, %v1423
      %v1428 = vand.u32 2147483647, %v1138
      %vm1429 = vcmp.eq.f32.partialorder %v1428, 8.507059e+37
      %v1430 = vand.u32 %v1138, 2147483648
      %v1431 = vor.u32 1.1754944e-38, %v1430
      %v1432 = vsel %vm1429, %v1431, %v1427
      %v1433 = vrcp.pop %v1141
      %v1434 = vmul.f32 %v1141, %v1433
      %v1435 = vsub.f32 1.0, %v1434
      %v1436 = vmul.f32 %v1433, %v1435
      %v1437 = vadd.f32 %v1433, %v1436
      %vm1438 = vweird.f32 %v1141
      %vm1439 = vweird.f32 %v1433
      %vm1440 = vmor %vm1438, %vm1439
      %v1441 = vsel %vm1440, %v1433, %v1437
      %v1442 = vand.u32 2147483647, %v1141
      %vm1443 = vcmp.eq.f32.partialorder %v1442, 8.507059e+37
      %v1444 = vand.u32 %v1141, 2147483648
      %v1445 = vor.u32 1.1754944e-38, %v1444
      %v1446 = vsel %vm1443, %v1445, %v1441
      %v1447 = vrcp.pop %v1144
      %v1448 = vmul.f32 %v1144, %v1447
      %v1449 = vsub.f32 1.0, %v1448
      %v1450 = vmul.f32 %v1447, %v1449
      %v1451 = vadd.f32 %v1447, %v1450
      %vm1452 = vweird.f32 %v1144
      %vm1453 = vweird.f32 %v1447
      %vm1454 = vmor %vm1452, %vm1453
      %v1455 = vsel %vm1454, %v1447, %v1451
      %v1456 = vand.u32 2147483647, %v1144
      %vm1457 = vcmp.eq.f32.partialorder %v1456, 8.507059e+37
      %v1458 = vand.u32 %v1144, 2147483648
      %v1459 = vor.u32 1.1754944e-38, %v1458
      %v1460 = vsel %vm1457, %v1459, %v1455
      %v1461 = vrcp.pop %v1147
      %v1462 = vmul.f32 %v1147, %v1461
      %v1463 = vsub.f32 1.0, %v1462
      %v1464 = vmul.f32 %v1461, %v1463
      %v1465 = vadd.f32 %v1461, %v1464
      %vm1466 = vweird.f32 %v1147
      %vm1467 = vweird.f32 %v1461
      %vm1468 = vmor %vm1466, %vm1467
      %v1469 = vsel %vm1468, %v1461, %v1465
      %v1470 = vand.u32 2147483647, %v1147
      %vm1471 = vcmp.eq.f32.partialorder %v1470, 8.507059e+37
      %v1472 = vand.u32 %v1147, 2147483648
      %v1473 = vor.u32 1.1754944e-38, %v1472
      %v1474 = vsel %vm1471, %v1473, %v1469
      %v1475 = vrcp.pop %v1150
      %v1476 = vmul.f32 %v1150, %v1475
      %v1477 = vsub.f32 1.0, %v1476
      %v1478 = vmul.f32 %v1475, %v1477
      %v1479 = vadd.f32 %v1475, %v1478
      %vm1480 = vweird.f32 %v1150
      %vm1481 = vweird.f32 %v1475
      %vm1482 = vmor %vm1480, %vm1481
      %v1483 = vsel %vm1482, %v1475, %v1479
      %v1484 = vand.u32 2147483647, %v1150
      %vm1485 = vcmp.eq.f32.partialorder %v1484, 8.507059e+37
      %v1486 = vand.u32 %v1150, 2147483648
      %v1487 = vor.u32 1.1754944e-38, %v1486
      %v1488 = vsel %vm1485, %v1487, %v1483
      %v1489 = vrcp.pop %v1153
      %v1490 = vmul.f32 %v1153, %v1489
      %v1491 = vsub.f32 1.0, %v1490
      %v1492 = vmul.f32 %v1489, %v1491
      %v1493 = vadd.f32 %v1489, %v1492
      %vm1494 = vweird.f32 %v1153
      %vm1495 = vweird.f32 %v1489
      %vm1496 = vmor %vm1494, %vm1495
      %v1497 = vsel %vm1496, %v1489, %v1493
      %v1498 = vand.u32 2147483647, %v1153
      %vm1499 = vcmp.eq.f32.partialorder %v1498, 8.507059e+37
      %v1500 = vand.u32 %v1153, 2147483648
      %v1501 = vor.u32 1.1754944e-38, %v1500
      %v1502 = vsel %vm1499, %v1501, %v1497
      %v1503 = vrcp.pop %v1156
      %v1504 = vmul.f32 %v1156, %v1503
      %v1505 = vsub.f32 1.0, %v1504
      %v1506 = vmul.f32 %v1503, %v1505
      %v1507 = vadd.f32 %v1503, %v1506
      %vm1508 = vweird.f32 %v1156
      %vm1509 = vweird.f32 %v1503
      %vm1510 = vmor %vm1508, %vm1509
      %v1511 = vsel %vm1510, %v1503, %v1507
      %v1512 = vand.u32 2147483647, %v1156
      %vm1513 = vcmp.eq.f32.partialorder %v1512, 8.507059e+37
      %v1514 = vand.u32 %v1156, 2147483648
      %v1515 = vor.u32 1.1754944e-38, %v1514
      %v1516 = vsel %vm1513, %v1515, %v1511
      %v1517 = vrcp.pop %v1159
      %v1518 = vmul.f32 %v1159, %v1517
      %v1519 = vsub.f32 1.0, %v1518
      %v1520 = vmul.f32 %v1517, %v1519
      %v1521 = vadd.f32 %v1517, %v1520
      %vm1522 = vweird.f32 %v1159
      %vm1523 = vweird.f32 %v1517
      %vm1524 = vmor %vm1522, %vm1523
      %v1525 = vsel %vm1524, %v1517, %v1521
      %v1526 = vand.u32 2147483647, %v1159
      %vm1527 = vcmp.eq.f32.partialorder %v1526, 8.507059e+37
      %v1528 = vand.u32 %v1159, 2147483648
      %v1529 = vor.u32 1.1754944e-38, %v1528
      %v1530 = vsel %vm1527, %v1529, %v1525
      %v1531 = vrcp.pop %v1162
      %v1532 = vmul.f32 %v1162, %v1531
      %v1533 = vsub.f32 1.0, %v1532
      %v1534 = vmul.f32 %v1531, %v1533
      %v1535 = vadd.f32 %v1531, %v1534
      %vm1536 = vweird.f32 %v1162
      %vm1537 = vweird.f32 %v1531
      %vm1538 = vmor %vm1536, %vm1537
      %v1539 = vsel %vm1538, %v1531, %v1535
      %v1540 = vand.u32 2147483647, %v1162
      %vm1541 = vcmp.eq.f32.partialorder %v1540, 8.507059e+37
      %v1542 = vand.u32 %v1162, 2147483648
      %v1543 = vor.u32 1.1754944e-38, %v1542
      %v1544 = vsel %vm1541, %v1543, %v1539
      %v1545 = vrcp.pop %v1165
      %v1546 = vmul.f32 %v1165, %v1545
      %v1547 = vsub.f32 1.0, %v1546
      %v1548 = vmul.f32 %v1545, %v1547
      %v1549 = vadd.f32 %v1545, %v1548
      %vm1550 = vweird.f32 %v1165
      %vm1551 = vweird.f32 %v1545
      %vm1552 = vmor %vm1550, %vm1551
      %v1553 = vsel %vm1552, %v1545, %v1549
      %v1554 = vand.u32 2147483647, %v1165
      %vm1555 = vcmp.eq.f32.partialorder %v1554, 8.507059e+37
      %v1556 = vand.u32 %v1165, 2147483648
      %v1557 = vor.u32 1.1754944e-38, %v1556
      %v1558 = vsel %vm1555, %v1557, %v1553
      %v1559 = vrcp.pop %v1168
      %v1560 = vmul.f32 %v1168, %v1559
      %v1561 = vsub.f32 1.0, %v1560
      %v1562 = vmul.f32 %v1559, %v1561
      %v1563 = vadd.f32 %v1559, %v1562
      %vm1564 = vweird.f32 %v1168
      %vm1565 = vweird.f32 %v1559
      %vm1566 = vmor %vm1564, %vm1565
      %v1567 = vsel %vm1566, %v1559, %v1563
      %v1568 = vand.u32 2147483647, %v1168
      %vm1569 = vcmp.eq.f32.partialorder %v1568, 8.507059e+37
      %v1570 = vand.u32 %v1168, 2147483648
      %v1571 = vor.u32 1.1754944e-38, %v1570
      %v1572 = vsel %vm1569, %v1571, %v1567
      %v1573 = vrcp.pop %v1171
      %v1574 = vmul.f32 %v1171, %v1573
      %v1575 = vsub.f32 1.0, %v1574
      %v1576 = vmul.f32 %v1573, %v1575
      %v1577 = vadd.f32 %v1573, %v1576
      %vm1578 = vweird.f32 %v1171
      %vm1579 = vweird.f32 %v1573
      %vm1580 = vmor %vm1578, %vm1579
      %v1581 = vsel %vm1580, %v1573, %v1577
      %v1582 = vand.u32 2147483647, %v1171
      %vm1583 = vcmp.eq.f32.partialorder %v1582, 8.507059e+37
      %v1584 = vand.u32 %v1171, 2147483648
      %v1585 = vor.u32 1.1754944e-38, %v1584
      %v1586 = vsel %vm1583, %v1585, %v1581
      %v1587 = vrcp.pop %v1174
      %v1588 = vmul.f32 %v1174, %v1587
      %v1589 = vsub.f32 1.0, %v1588
      %v1590 = vmul.f32 %v1587, %v1589
      %v1591 = vadd.f32 %v1587, %v1590
      %vm1592 = vweird.f32 %v1174
      %vm1593 = vweird.f32 %v1587
      %vm1594 = vmor %vm1592, %vm1593
      %v1595 = vsel %vm1594, %v1587, %v1591
      %v1596 = vand.u32 2147483647, %v1174
      %vm1597 = vcmp.eq.f32.partialorder %v1596, 8.507059e+37
      %v1598 = vand.u32 %v1174, 2147483648
      %v1599 = vor.u32 1.1754944e-38, %v1598
      %v1600 = vsel %vm1597, %v1599, %v1595
      %v1601 = vrcp.pop %v1177
      %v1602 = vmul.f32 %v1177, %v1601
      %v1603 = vsub.f32 1.0, %v1602
      %v1604 = vmul.f32 %v1601, %v1603
      %v1605 = vadd.f32 %v1601, %v1604
      %vm1606 = vweird.f32 %v1177
      %vm1607 = vweird.f32 %v1601
      %vm1608 = vmor %vm1606, %vm1607
      %v1609 = vsel %vm1608, %v1601, %v1605
      %v1610 = vand.u32 2147483647, %v1177
      %vm1611 = vcmp.eq.f32.partialorder %v1610, 8.507059e+37
      %v1612 = vand.u32 %v1177, 2147483648
      %v1613 = vor.u32 1.1754944e-38, %v1612
      %v1614 = vsel %vm1611, %v1613, %v1609
      %v1615 = vrcp.pop %v1180
      %v1616 = vmul.f32 %v1180, %v1615
      %v1617 = vsub.f32 1.0, %v1616
      %v1618 = vmul.f32 %v1615, %v1617
      %v1619 = vadd.f32 %v1615, %v1618
      %vm1620 = vweird.f32 %v1180
      %vm1621 = vweird.f32 %v1615
      %vm1622 = vmor %vm1620, %vm1621
      %v1623 = vsel %vm1622, %v1615, %v1619
      %v1624 = vand.u32 2147483647, %v1180
      %vm1625 = vcmp.eq.f32.partialorder %v1624, 8.507059e+37
      %v1626 = vand.u32 %v1180, 2147483648
      %v1627 = vor.u32 1.1754944e-38, %v1626
      %v1628 = vsel %vm1625, %v1627, %v1623
      %v1629 = vmul.f32 %v958, %v1194
      %v1630 = vmul.f32 %v960, %v1194
      %v1631 = vmul.f32 %v962, %v1208
      %v1632 = vmul.f32 %v964, %v1208
      %v1633 = vmul.f32 %v966, %v1222
      %v1634 = vmul.f32 %v968, %v1222
      %v1635 = vmul.f32 %v970, %v1236
      %v1636 = vmul.f32 %v972, %v1236
      %v1637 = vmul.f32 %v974, %v1250
      %v1638 = vmul.f32 %v976, %v1250
      %v1639 = vmul.f32 %v978, %v1264
      %v1640 = vmul.f32 %v980, %v1264
      %v1641 = vmul.f32 %v982, %v1278
      %v1642 = vmul.f32 %v984, %v1278
      %v1643 = vmul.f32 %v986, %v1292
      %v1644 = vmul.f32 %v988, %v1292
      %v1645 = vmul.f32 %v990, %v1306
      %v1646 = vmul.f32 %v992, %v1306
      %v1647 = vmul.f32 %v994, %v1320
      %v1648 = vmul.f32 %v996, %v1320
      %v1649 = vmul.f32 %v998, %v1334
      %v1650 = vmul.f32 %v1000, %v1334
      %v1651 = vmul.f32 %v1002, %v1348
      %v1652 = vmul.f32 %v1004, %v1348
      %v1653 = vmul.f32 %v1006, %v1362
      %v1654 = vmul.f32 %v1008, %v1362
      %v1655 = vmul.f32 %v1010, %v1376
      %v1656 = vmul.f32 %v1012, %v1376
      %v1657 = vmul.f32 %v1014, %v1390
      %v1658 = vmul.f32 %v1016, %v1390
      %v1659 = vmul.f32 %v1018, %v1404
      %v1660 = vmul.f32 %v1020, %v1404
      %v1661 = vmul.f32 %v1022, %v1418
      %v1662 = vmul.f32 %v1024, %v1418
      %v1663 = vmul.f32 %v1026, %v1432
      %v1664 = vmul.f32 %v1028, %v1432
      %v1665 = vmul.f32 %v1030, %v1446
      %v1666 = vmul.f32 %v1032, %v1446
      %v1667 = vmul.f32 %v1034, %v1460
      %v1668 = vmul.f32 %v1036, %v1460
      %v1669 = vmul.f32 %v1038, %v1474
      %v1670 = vmul.f32 %v1040, %v1474
      %v1671 = vmul.f32 %v1042, %v1488
      %v1672 = vmul.f32 %v1044, %v1488
      %v1673 = vmul.f32 %v1046, %v1502
      %v1674 = vmul.f32 %v1048, %v1502
      %v1675 = vmul.f32 %v1050, %v1516
      %v1676 = vmul.f32 %v1052, %v1516
      %v1677 = vmul.f32 %v1054, %v1530
      %v1678 = vmul.f32 %v1056, %v1530
      %v1679 = vmul.f32 %v1058, %v1544
      %v1680 = vmul.f32 %v1060, %v1544
      %v1681 = vmul.f32 %v1062, %v1558
      %v1682 = vmul.f32 %v1064, %v1558
      %v1683 = vmul.f32 %v1066, %v1572
      %v1684 = vmul.f32 %v1068, %v1572
      %v1685 = vmul.f32 %v1070, %v1586
      %v1686 = vmul.f32 %v1072, %v1586
      %v1687 = vmul.f32 %v1074, %v1600
      %v1688 = vmul.f32 %v1076, %v1600
      %v1689 = vmul.f32 %v1078, %v1614
      %v1690 = vmul.f32 %v1080, %v1614
      %v1691 = vmul.f32 %v1082, %v1628
      %v1692 = vmul.f32 %v1084, %v1628
      %1693 = vmatpush.xpose.msra.mxu0 %v1659
      %1694 = vmatpush.xpose.msra.mxu0 %v1657
      %1695 = vmatpush.xpose.msra.mxu0 %v1655
      %1696 = vmatpush.xpose.msra.mxu0 %v1653
      %1697 = vmatpush.xpose.msra.mxu0 %v1651
      %1698 = vmatpush.xpose.msra.mxu0 %v1649
      %1699 = vmatpush.xpose.msra.mxu0 %v1647
      %1700 = vmatpush.xpose.msra.mxu0 %v1645
      %1701 = vmatpush.xpose.msra.mxu0 %v1643
      %1702 = vmatpush.xpose.msra.mxu0 %v1641
      %1703 = vmatpush.xpose.msra.mxu0 %v1639
      %1704 = vmatpush.xpose.msra.mxu0 %v1637
      %1705 = vmatpush.xpose.msra.mxu0 %v1635
      %1706 = vmatpush.xpose.msra.mxu0 %v1633
      %1707 = vmatpush.xpose.msra.mxu0 %v1631
      %1708 = vmatpush.xpose.msra.mxu0 %v1629
      %1709 = vmatmul.f32.gmra.mxu0 %v340
      %v1710 = vpop.f32.mrf.mxu0
      %v1711 = vadd.f32 0.0, %v1710
      %1712 = vmatmul.f32.gmra.mxu0 %v343
      %v1713 = vpop.f32.mrf.mxu0
      %v1714 = vadd.f32 0.0, %v1713
      %1715 = vmatmul.f32.gmra.mxu0 %v346
      %v1716 = vpop.f32.mrf.mxu0
      %v1717 = vadd.f32 0.0, %v1716
      %1718 = vmatmul.f32.gmra.mxu0 %v349
      %v1719 = vpop.f32.mrf.mxu0
      %v1720 = vadd.f32 0.0, %v1719
      %1721 = vmatmul.f32.gmra.mxu0 %v352
      %v1722 = vpop.f32.mrf.mxu0
      %v1723 = vadd.f32 0.0, %v1722
      %1724 = vmatmul.f32.gmra.mxu0 %v355
      %v1725 = vpop.f32.mrf.mxu0
      %v1726 = vadd.f32 0.0, %v1725
      %1727 = vmatmul.f32.gmra.mxu0 %v358
      %v1728 = vpop.f32.mrf.mxu0
      %v1729 = vadd.f32 0.0, %v1728
      %1730 = vmatmul.f32.gmra.mxu0 %v361
      %v1731 = vpop.f32.mrf.mxu0
      %v1732 = vadd.f32 0.0, %v1731
      %1733 = vdwg.mxu0
      %1734 = vmatpush.xpose.msra.mxu0 %v1660
      %1735 = vmatpush.xpose.msra.mxu0 %v1658
      %1736 = vmatpush.xpose.msra.mxu0 %v1656
      %1737 = vmatpush.xpose.msra.mxu0 %v1654
      %1738 = vmatpush.xpose.msra.mxu0 %v1652
      %1739 = vmatpush.xpose.msra.mxu0 %v1650
      %1740 = vmatpush.xpose.msra.mxu0 %v1648
      %1741 = vmatpush.xpose.msra.mxu0 %v1646
      %1742 = vmatpush.xpose.msra.mxu0 %v1644
      %1743 = vmatpush.xpose.msra.mxu0 %v1642
      %1744 = vmatpush.xpose.msra.mxu0 %v1640
      %1745 = vmatpush.xpose.msra.mxu0 %v1638
      %1746 = vmatpush.xpose.msra.mxu0 %v1636
      %1747 = vmatpush.xpose.msra.mxu0 %v1634
      %1748 = vmatpush.xpose.msra.mxu0 %v1632
      %1749 = vmatpush.xpose.msra.mxu0 %v1630
      %1750 = vmatmul.f32.gmra.mxu0 %v387
      %v1751 = vpop.f32.mrf.mxu0
      %v1752 = vadd.f32 %v1711, %v1751
      %1753 = vmatmul.f32.gmra.mxu0 %v390
      %v1754 = vpop.f32.mrf.mxu0
      %v1755 = vadd.f32 %v1714, %v1754
      %1756 = vmatmul.f32.gmra.mxu0 %v393
      %v1757 = vpop.f32.mrf.mxu0
      %v1758 = vadd.f32 %v1717, %v1757
      %1759 = vmatmul.f32.gmra.mxu0 %v396
      %v1760 = vpop.f32.mrf.mxu0
      %v1761 = vadd.f32 %v1720, %v1760
      %1762 = vmatmul.f32.gmra.mxu0 %v399
      %v1763 = vpop.f32.mrf.mxu0
      %v1764 = vadd.f32 %v1723, %v1763
      %1765 = vmatmul.f32.gmra.mxu0 %v402
      %v1766 = vpop.f32.mrf.mxu0
      %v1767 = vadd.f32 %v1726, %v1766
      %1768 = vmatmul.f32.gmra.mxu0 %v405
      %v1769 = vpop.f32.mrf.mxu0
      %v1770 = vadd.f32 %v1729, %v1769
      %1771 = vmatmul.f32.gmra.mxu0 %v408
      %v1772 = vpop.f32.mrf.mxu0
      %v1773 = vadd.f32 %v1732, %v1772
      %1774 = vdwg.mxu0
      %1775 = vmatpush.xpose.msra.mxu0 %v1691
      %1776 = vmatpush.xpose.msra.mxu0 %v1689
      %1777 = vmatpush.xpose.msra.mxu0 %v1687
      %1778 = vmatpush.xpose.msra.mxu0 %v1685
      %1779 = vmatpush.xpose.msra.mxu0 %v1683
      %1780 = vmatpush.xpose.msra.mxu0 %v1681
      %1781 = vmatpush.xpose.msra.mxu0 %v1679
      %1782 = vmatpush.xpose.msra.mxu0 %v1677
      %1783 = vmatpush.xpose.msra.mxu0 %v1675
      %1784 = vmatpush.xpose.msra.mxu0 %v1673
      %1785 = vmatpush.xpose.msra.mxu0 %v1671
      %1786 = vmatpush.xpose.msra.mxu0 %v1669
      %1787 = vmatpush.xpose.msra.mxu0 %v1667
      %1788 = vmatpush.xpose.msra.mxu0 %v1665
      %1789 = vmatpush.xpose.msra.mxu0 %v1663
      %1790 = vmatpush.xpose.msra.mxu0 %v1661
      %1791 = vmatmul.f32.gmra.mxu0 %v340
      %v1792 = vpop.f32.mrf.mxu0
      %v1793 = vadd.f32 0.0, %v1792
      %1794 = vmatmul.f32.gmra.mxu0 %v343
      %v1795 = vpop.f32.mrf.mxu0
      %v1796 = vadd.f32 0.0, %v1795
      %1797 = vmatmul.f32.gmra.mxu0 %v346
      %v1798 = vpop.f32.mrf.mxu0
      %v1799 = vadd.f32 0.0, %v1798
      %1800 = vmatmul.f32.gmra.mxu0 %v349
      %v1801 = vpop.f32.mrf.mxu0
      %v1802 = vadd.f32 0.0, %v1801
      %1803 = vmatmul.f32.gmra.mxu0 %v352
      %v1804 = vpop.f32.mrf.mxu0
      %v1805 = vadd.f32 0.0, %v1804
      %1806 = vmatmul.f32.gmra.mxu0 %v355
      %v1807 = vpop.f32.mrf.mxu0
      %v1808 = vadd.f32 0.0, %v1807
      %1809 = vmatmul.f32.gmra.mxu0 %v358
      %v1810 = vpop.f32.mrf.mxu0
      %v1811 = vadd.f32 0.0, %v1810
      %1812 = vmatmul.f32.gmra.mxu0 %v361
      %v1813 = vpop.f32.mrf.mxu0
      %v1814 = vadd.f32 0.0, %v1813
      %1815 = vdwg.mxu0
      %1816 = vmatpush.xpose.msra.mxu0 %v1692
      %1817 = vmatpush.xpose.msra.mxu0 %v1690
      %1818 = vmatpush.xpose.msra.mxu0 %v1688
      %1819 = vmatpush.xpose.msra.mxu0 %v1686
      %1820 = vmatpush.xpose.msra.mxu0 %v1684
      %1821 = vmatpush.xpose.msra.mxu0 %v1682
      %1822 = vmatpush.xpose.msra.mxu0 %v1680
      %1823 = vmatpush.xpose.msra.mxu0 %v1678
      %1824 = vmatpush.xpose.msra.mxu0 %v1676
      %1825 = vmatpush.xpose.msra.mxu0 %v1674
      %1826 = vmatpush.xpose.msra.mxu0 %v1672
      %1827 = vmatpush.xpose.msra.mxu0 %v1670
      %1828 = vmatpush.xpose.msra.mxu0 %v1668
      %1829 = vmatpush.xpose.msra.mxu0 %v1666
      %1830 = vmatpush.xpose.msra.mxu0 %v1664
      %1831 = vmatpush.xpose.msra.mxu0 %v1662
      %1832 = vmatmul.f32.gmra.mxu0 %v387
      %v1833 = vpop.f32.mrf.mxu0
      %v1834 = vadd.f32 %v1793, %v1833
      %1835 = vmatmul.f32.gmra.mxu0 %v390
      %v1836 = vpop.f32.mrf.mxu0
      %v1837 = vadd.f32 %v1796, %v1836
      %1838 = vmatmul.f32.gmra.mxu0 %v393
      %v1839 = vpop.f32.mrf.mxu0
      %v1840 = vadd.f32 %v1799, %v1839
      %1841 = vmatmul.f32.gmra.mxu0 %v396
      %v1842 = vpop.f32.mrf.mxu0
      %v1843 = vadd.f32 %v1802, %v1842
      %1844 = vmatmul.f32.gmra.mxu0 %v399
      %v1845 = vpop.f32.mrf.mxu0
      %v1846 = vadd.f32 %v1805, %v1845
      %1847 = vmatmul.f32.gmra.mxu0 %v402
      %v1848 = vpop.f32.mrf.mxu0
      %v1849 = vadd.f32 %v1808, %v1848
      %1850 = vmatmul.f32.gmra.mxu0 %v405
      %v1851 = vpop.f32.mrf.mxu0
      %v1852 = vadd.f32 %v1811, %v1851
      %1853 = vmatmul.f32.gmra.mxu0 %v408
      %v1854 = vpop.f32.mrf.mxu0
      %v1855 = vadd.f32 %v1814, %v1854
      %1856 = vdwg.mxu0
      %s1857 = sld [smem:[#allocation2]]
      %v1858 = vstv %s1857
      %v1859 = vmul.f32 %v1858, %v1752
      %v1860 = vmul.f32 %v1858, %v1834
      %v1861 = vmul.f32 %v1858, %v1755
      %v1862 = vmul.f32 %v1858, %v1837
      %v1863 = vmul.f32 %v1858, %v1758
      %v1864 = vmul.f32 %v1858, %v1840
      %v1865 = vmul.f32 %v1858, %v1761
      %v1866 = vmul.f32 %v1858, %v1843
      %v1867 = vmul.f32 %v1858, %v1764
      %v1868 = vmul.f32 %v1858, %v1846
      %v1869 = vmul.f32 %v1858, %v1767
      %v1870 = vmul.f32 %v1858, %v1849
      %v1871 = vmul.f32 %v1858, %v1770
      %v1872 = vmul.f32 %v1858, %v1852
      %v1873 = vmul.f32 %v1858, %v1773
      %v1874 = vmul.f32 %v1858, %v1855
      %v1875 = vadd.f32 %v1859, %v199
      %v1876 = vadd.f32 %v1860, %v200
      %v1877 = vadd.f32 %v1861, %v201
      %v1878 = vadd.f32 %v1862, %v202
      %v1879 = vadd.f32 %v1863, %v203
      %v1880 = vadd.f32 %v1864, %v204
      %v1881 = vadd.f32 %v1865, %v205
      %v1882 = vadd.f32 %v1866, %v206
      %v1883 = vadd.f32 %v1867, %v207
      %v1884 = vadd.f32 %v1868, %v208
      %v1885 = vadd.f32 %v1869, %v209
      %v1886 = vadd.f32 %v1870, %v210
      %v1887 = vadd.f32 %v1871, %v211
      %v1888 = vadd.f32 %v1872, %v212
      %v1889 = vadd.f32 %v1873, %v213
      %v1890 = vadd.f32 %v1874, %v214
      %1891 = vst [vmem:[%s198] sm:$0xff] %v1875
      %1892 = vst [vmem:[%s198 + $0x8] sm:$0xff] %v1876
      %1893 = vst [vmem:[%s198 + $0x10] sm:$0xff] %v1877
      %1894 = vst [vmem:[%s198 + $0x18] sm:$0xff] %v1878
      %1895 = vst [vmem:[%s198 + $0x20] sm:$0xff] %v1879
      %1896 = vst [vmem:[%s198 + $0x28] sm:$0xff] %v1880
      %1897 = vst [vmem:[%s198 + $0x30] sm:$0xff] %v1881
      %1898 = vst [vmem:[%s198 + $0x38] sm:$0xff] %v1882
      %1899 = vst [vmem:[%s198 + $0x40] sm:$0xff] %v1883
      %1900 = vst [vmem:[%s198 + $0x48] sm:$0xff] %v1884
      %1901 = vst [vmem:[%s198 + $0x50] sm:$0xff] %v1885
      %1902 = vst [vmem:[%s198 + $0x58] sm:$0xff] %v1886
      %1903 = vst [vmem:[%s198 + $0x60] sm:$0xff] %v1887
      %1904 = vst [vmem:[%s198 + $0x68] sm:$0xff] %v1888
      %1905 = vst [vmem:[%s198 + $0x70] sm:$0xff] %v1889
      %1906 = vst [vmem:[%s198 + $0x78] sm:$0xff] %v1890
      %p1907 = scmp.lt.s32.totalorder %s16, 1
      %s1908 = scalar_select %p1907, %s16, 1
      %s1909 = smul.addr %s1908, 16
      %s1910 = smul.addr %s1909, 8
      %s1911 = scalar_lea.vmem %s4, %s1910
      // Predicated region
      $region37: #{pmm_forward.1} parent=35 // pred_check
        %p1912 = pneg %p123
      $region38: #{pmm_forward.1} parent=35 // pred_check_branch
        %1914 = sbr.rel (%p1912) target = $region40
      $region39: #{pmm_forward.1} parent=35 // pred_region
        _
      $region40: #{pmm_forward.1} parent=35 // pred_fallthru
        _
    $region36: #{pmm_forward.1} parent=5 // pred_fallthru
      _
    %p1915 = scmp.le.s32.totalorder 2, %s11
    // Predicated region
    $region41: #{pmm_forward.1} parent=5 // pred_check
      %p1916 = pneg %p1915
    $region42: #{pmm_forward.1} parent=5 // pred_check_branch
      %1918 = sbr.rel (%p1916) target = $region44
    $region43: #{pmm_forward.1} parent=5 // pred_region
      %s1919 = ssub.s32 %s11, 2
      // Predicated region
      $region45: #{pmm_forward.1} parent=43 // pred_check
        %p1920 = pneg %p129
      $region46: #{pmm_forward.1} parent=43 // pred_check_branch
        %1922 = sbr.rel (%p1920) target = $region48
      $region47: #{pmm_forward.1} parent=43 // pred_region
        %p1923 = scmp.lt.s32.totalorder %s17, 1
        %s1924 = scalar_select %p1923, %s17, 1
        %s1925 = smul.addr %s1924, 16
        %s1926 = smul.addr %s1925, 8
        %s1927 = scalar_lea.vmem %s4, %s1926
      $region48: #{pmm_forward.1} parent=43 // pred_fallthru
        _
    $region44: #{pmm_forward.1} parent=5 // pred_fallthru
      _
  $region6: #{pmm_forward.1} parent=0 // loop_footer
    %s15 = sadd.s32 1, %s11
  $region7: #{pmm_forward.1} parent=0 // loop_footer_branch
    %10 = sbr.rel target = $region3
  $region8: #{pmm_forward.1} parent=0 // loop_exit
    _

</llo_original>
